<compile_context>
chip_gen: v6e
topology: v6e:2x2x1
jax: 0.10.0
libtpu: 0.0.40
codegen_flags: <defaults>
</compile_context>

<pallas_src>
import jax
import jax.numpy as jnp
from jax.experimental import pallas as pl
from jax.experimental.pallas import tpu as pltpu

EPS = 1e-5


def _banded_conv_weights(w_hwio, W):
    """Fold the 3 dx taps of a 3x3 'SAME' conv into banded block matrices, one per dy.

    Returns (3, W*Cin, W*Cout) bf16 with
        out[dy, p*Cin+ci, x*Cout+co] = w[dy, (p-x)+1, ci, co]  if |p-x| <= 1 else 0,
    so that (row_slab @ out[dy]) computes the dy contribution of the conv for a whole
    image-row slab laid out with W*Cin in the lane dimension. Out-of-range columns
    (the zero padding) are handled by clipping the band, so the kernel needs no lane
    rolls/shifts and no im2col patch construction.
    """
    kh, kw, cin, cout = w_hwio.shape
    assert kh == 3 and kw == 3
    p = jnp.arange(W)[:, None]
    x = jnp.arange(W)[None, :]
    mats = []
    for dy in range(kh):
        m = jnp.zeros((W, cin, W, cout), jnp.float32)
        for d in (-1, 0, 1):
            band = (p - x == d).astype(jnp.float32)                      # (W, W)
            m = m + jnp.einsum("px,io->pixo", band, w_hwio[dy, d + 1])
        mats.append(m.reshape(W * cin, W * cout))
    return jnp.stack(mats).astype(jnp.bfloat16)                          # (3, WC, WCo)


def basic_block_forward(x_nhwc, params):
    """x_nhwc: (N, H, W, C) float32. Returns (N, H, W, C) float32."""
    N, H, W, C = x_nhwc.shape
    cout = params["w1"].shape[-1]
    assert cout == C, "stride=1 / no-downsample path requires Cin == Cout"
    WC = W * C
    rows = N * H
    inv_cnt = 1.0 / float(N * H * W)          # per-channel element count (training BN)

    # Host-side prep (done once): banded conv weights (bf16 MXU operands), BN affine
    # params tiled into the lane layout, per-channel lane-pooling matrix, and a free
    # reshape of x so W*C sits in the lane dimension.
    w1b = _banded_conv_weights(params["w1"], W)                           # (3, WC, WC)
    w2b = _banded_conv_weights(params["w2"], W)
    a1 = jnp.stack([jnp.tile(params["g1"], W),
                    jnp.tile(params["be1"], W)]).astype(jnp.float32)      # (2, WC)
    a2 = jnp.stack([jnp.tile(params["g2"], W),
                    jnp.tile(params["be2"], W)]).astype(jnp.float32)
    lane = jnp.arange(WC)
    pool = (lane[:, None] % C == lane[None, :] % C).astype(jnp.float32)   # (WC, WC)
    x_slab = x_nhwc.reshape(N, H, WC)          # free: W and C are contiguous in HBM

    def kernel(x_ref, w1_ref, w2_ref, a1_ref, a2_ref, pool_ref, o_ref, xpad_s):
        xv = x_ref[...]                        # (N, H, WC) f32, fetched once
        poolm = pool_ref[...]                  # (WC, WC) f32, loaded once

        # Zero the halo scratch ONCE; the top/bottom border rows stay zero forever and
        # each conv only rewrites the interior (already cast to bf16 -> cast happens once).
        xpad_s[...] = jnp.zeros(xpad_s.shape, xpad_s.dtype)

        def conv3x3(w_ref):
            # 3 MXU matmuls (one per dy); dx taps + column padding live in the banded
            # weights, so the only data movement is three sublane-shifted slab loads.
            parts = [
                jnp.dot(xpad_s[:, dy:dy + H, :].reshape(rows, WC), w_ref[dy],
                        preferred_element_type=jnp.float32)
                for dy in range(3)
            ]
            return parts[0] + parts[1] + parts[2]                         # (rows, WC) f32

        def batchnorm(v, a_ref):
            # Two-pass per-channel batch statistics (robust when mean >> std).
            # Channel reduce/broadcast stays in the lane-folded layout via `poolm`.
            col_sum = jnp.sum(v, axis=0, keepdims=True)                   # (1, WC)
            mean = jnp.dot(col_sum, poolm,
                           preferred_element_type=jnp.float32) * inv_cnt  # (1, WC)
            d = v - mean
            col_sq = jnp.sum(d * d, axis=0, keepdims=True)
            var = jnp.dot(col_sq, poolm,
                          preferred_element_type=jnp.float32) * inv_cnt
            scale = a_ref[0:1, :] * jax.lax.rsqrt(var + EPS)
            return d * scale + a_ref[1:2, :]

        # conv1 -> bn1 -> relu   (conv bias dropped: cancelled by BN mean subtraction)
        xpad_s[:, 1:H + 1, :] = xv.astype(jnp.bfloat16)
        h = conv3x3(w1_ref)
        y = jnp.maximum(batchnorm(h, a1_ref), 0.0)

        # conv2 -> bn2 -> +identity -> relu
        xpad_s[:, 1:H + 1, :] = y.reshape(N, H, WC).astype(jnp.bfloat16)
        g = conv3x3(w2_ref)
        out = jnp.maximum(batchnorm(g, a2_ref) + xv.reshape(rows, WC), 0.0)
        o_ref[...] = out.reshape(N, H, WC)     # 64-lane aligned stores (lane-dense slab)

    out = pl.pallas_call(
        kernel,
        out_shape=jax.ShapeDtypeStruct((N, H, WC), jnp.float32),
        grid_spec=pltpu.PrefetchScalarGridSpec(
            num_scalar_prefetch=0,
            grid=(1,),                          # whole batch in one step: M = N*H rows
            in_specs=[
                pl.BlockSpec((N, H, WC), lambda i: (0, 0, 0)),
                pl.BlockSpec((3, WC, WC), lambda i: (0, 0, 0)),
                pl.BlockSpec((3, WC, WC), lambda i: (0, 0, 0)),
                pl.BlockSpec((2, WC), lambda i: (0, 0)),
                pl.BlockSpec((2, WC), lambda i: (0, 0)),
                pl.BlockSpec((WC, WC), lambda i: (0, 0)),
            ],
            out_specs=pl.BlockSpec((N, H, WC), lambda i: (0, 0, 0)),
            scratch_shapes=[pltpu.VMEM((N, H + 2, WC), jnp.bfloat16)],   # zero-halo slab
        ),
        compiler_params=pltpu.CompilerParams(
            dimension_semantics=("arbitrary",),
            vmem_limit_bytes=32 * 1024 * 1024),
    )(x_slab, w1b, w2b, a1, a2, pool)
    return out.reshape(N, H, W, C)


def _reference(x_nhwc, params):
    """Pure-JAX f32 reference (PyTorch BasicBlock in train() mode, biases kept)."""
    def conv(x, w, b):
        y = jax.lax.conv_general_dilated(
            x, w, window_strides=(1, 1), padding="SAME",
            dimension_numbers=("NHWC", "HWIO", "NHWC"))
        return y + b                      # bias kept: shows it is a no-op before BN

    def bn(y, g, be):
        mean = jnp.mean(y, axis=(0, 1, 2), keepdims=True)
        var = jnp.mean((y - mean) ** 2, axis=(0, 1, 2), keepdims=True)
        return (y - mean) * jax.lax.rsqrt(var + EPS) * g + be

    h = jnp.maximum(bn(conv(x_nhwc, params["w1"], params["b1"]),
                       params["g1"], params["be1"]), 0.0)
    o = bn(conv(h, params["w2"], params["b2"]),
           params["g2"], params["be2"]) + x_nhwc
    return jnp.maximum(o, 0.0)


if __name__ == "__main__":
    key = jax.random.PRNGKey(0)
    N, Cin, H, W = 2, 4, 16, 16
    Cout = 4  # expansion = 1, stride = 1, no downsample

    k = jax.random.split(key, 9)
    # PyTorch-style NCHW input, transposed once at the boundary to NHWC.
    x_nchw = jax.random.normal(k[0], (N, Cin, H, W), jnp.float32)
    x_nhwc = jnp.transpose(x_nchw, (0, 2, 3, 1))

    params = {
        "w1": jax.random.normal(k[1], (3, 3, Cin, Cout), jnp.float32)
              * (2.0 / (Cin * 9)) ** 0.5,
        "b1": jax.random.uniform(k[2], (Cout,), jnp.float32, -0.1, 0.1),
        "g1": 1.0 + 0.1 * jax.random.normal(k[3], (Cout,), jnp.float32),
        "be1": 0.1 * jax.random.normal(k[4], (Cout,), jnp.float32),
        "w2": jax.random.normal(k[5], (3, 3, Cout, Cout), jnp.float32)
              * (2.0 / (Cout * 9)) ** 0.5,
        "b2": jax.random.uniform(k[6], (Cout,), jnp.float32, -0.1, 0.1),
        "g2": 1.0 + 0.1 * jax.random.normal(k[7], (Cout,), jnp.float32),
        "be2": 0.1 * jax.random.normal(k[8], (Cout,), jnp.float32),
    }

    out = basic_block_forward(x_nhwc, params)
    out = jax.block_until_ready(out)

    ref = _reference(x_nhwc, params)
    assert out.shape == (N, H, W, Cout)
    # Tolerance accommodates bf16 MXU operands (f32 accumulation, f32 BN stats).
    assert jnp.allclose(out, ref, atol=3e-2, rtol=3e-2), (
        "mismatch vs reference: max abs diff "
        f"{float(jnp.max(jnp.abs(out - ref)))}")
    print("KERNEL_OK")
</pallas_src>

<mosaic_0001>
module attributes {stable_mosaic.version = 11 : i64} {
  func.func @kernel(%arg0: i32, %arg1: memref<2x16x64xf32, #tpu.memory_space<vmem>>, %arg2: memref<3x64x64xbf16, #tpu.memory_space<vmem>>, %arg3: memref<3x64x64xbf16, #tpu.memory_space<vmem>>, %arg4: memref<2x64xf32, #tpu.memory_space<vmem>>, %arg5: memref<2x64xf32, #tpu.memory_space<vmem>>, %arg6: memref<64x64xf32, #tpu.memory_space<vmem>>, %arg7: memref<2x16x64xf32, #tpu.memory_space<vmem>>, %arg8: memref<2x18x64xbf16, #tpu.memory_space<vmem>>) attributes {dimension_semantics = [#tpu.dimension_semantics<arbitrary>], iteration_bounds = array<i64: 1>, scalar_prefetch = 0 : i64, scratch_operands = 1 : i64, tpu.core_type = #tpu.core_type<tc>, window_params = [{pipeline_mode = #tpu.pipeline_mode<synchronous>, transform_indices = @transform_0, window_bounds = array<i64: 2, 16, 64>}, {pipeline_mode = #tpu.pipeline_mode<synchronous>, transform_indices = @transform_1, window_bounds = array<i64: 3, 64, 64>}, {pipeline_mode = #tpu.pipeline_mode<synchronous>, transform_indices = @transform_2, window_bounds = array<i64: 3, 64, 64>}, {pipeline_mode = #tpu.pipeline_mode<synchronous>, transform_indices = @transform_3, window_bounds = array<i64: 2, 64>}, {pipeline_mode = #tpu.pipeline_mode<synchronous>, transform_indices = @transform_4, window_bounds = array<i64: 2, 64>}, {pipeline_mode = #tpu.pipeline_mode<synchronous>, transform_indices = @transform_5, window_bounds = array<i64: 64, 64>}, {pipeline_mode = #tpu.pipeline_mode<synchronous>, transform_indices = @transform_6, window_bounds = array<i64: 2, 16, 64>}]} {
    %c0 = arith.constant 0 : index
    %c0_0 = arith.constant 0 : index
    %c0_1 = arith.constant 0 : index
    %0 = vector.load %arg1[%c0, %c0_0, %c0_1] : memref<2x16x64xf32, #tpu.memory_space<vmem>>, vector<2x16x64xf32>
    %c0_2 = arith.constant 0 : index
    %c0_3 = arith.constant 0 : index
    %1 = vector.load %arg6[%c0_2, %c0_3] : memref<64x64xf32, #tpu.memory_space<vmem>>, vector<64x64xf32>
    %cst = arith.constant 0.000000e+00 : bf16
    %2 = vector.broadcast %cst : bf16 to vector<2x18x64xbf16>
    %c0_4 = arith.constant 0 : index
    %c0_5 = arith.constant 0 : index
    %c0_6 = arith.constant 0 : index
    %3 = vector.load %arg8[%c0_4, %c0_5, %c0_6] : memref<2x18x64xbf16, #tpu.memory_space<vmem>>, vector<2x18x64xbf16>
    tpu.vector_store %arg8[%c0_4, %c0_5, %c0_6], %2 {strides = array<i32>} : memref<2x18x64xbf16, #tpu.memory_space<vmem>>, vector<2x18x64xbf16>,
    %4 = arith.truncf %0 : vector<2x16x64xf32> to vector<2x16x64xbf16>
    %c0_7 = arith.constant 0 : index
    %c1 = arith.constant 1 : index
    %c0_8 = arith.constant 0 : index
    %5 = vector.load %arg8[%c0_7, %c1, %c0_8] : memref<2x18x64xbf16, #tpu.memory_space<vmem>>, vector<2x16x64xbf16>
    tpu.vector_store %arg8[%c0_7, %c1, %c0_8], %4 {strides = array<i32>} : memref<2x18x64xbf16, #tpu.memory_space<vmem>>, vector<2x16x64xbf16>,
    %c0_9 = arith.constant 0 : index
    %c0_10 = arith.constant 0 : index
    %c0_11 = arith.constant 0 : index
    %6 = vector.load %arg8[%c0_9, %c0_10, %c0_11] : memref<2x18x64xbf16, #tpu.memory_space<vmem>>, vector<2x16x64xbf16>
    %7 = vector.shape_cast %6 : vector<2x16x64xbf16> to vector<32x64xbf16>
    %c0_12 = arith.constant 0 : index
    %c0_13 = arith.constant 0 : index
    %c0_14 = arith.constant 0 : index
    %8 = vector.load %arg2[%c0_12, %c0_13, %c0_14] : memref<3x64x64xbf16, #tpu.memory_space<vmem>>, vector<1x64x64xbf16>
    %9 = vector.shape_cast %8 : vector<1x64x64xbf16> to vector<64x64xbf16>
    %cst_15 = arith.constant dense<0.000000e+00> : vector<32x64xf32>
    %10 = tpu.matmul %7, %9, %cst_15 {dimension_numbers = #tpu.dot_dimension_numbers<[1], [0], [0], [1], [0, 0, 1, 1], [], []>} : vector<32x64xbf16>, vector<64x64xbf16>, vector<32x64xf32> -> vector<32x64xf32>
    %c0_16 = arith.constant 0 : index
    %c1_17 = arith.constant 1 : index
    %c0_18 = arith.constant 0 : index
    %11 = vector.load %arg8[%c0_16, %c1_17, %c0_18] : memref<2x18x64xbf16, #tpu.memory_space<vmem>>, vector<2x16x64xbf16>
    %12 = vector.shape_cast %11 : vector<2x16x64xbf16> to vector<32x64xbf16>
    %c1_19 = arith.constant 1 : index
    %c0_20 = arith.constant 0 : index
    %c0_21 = arith.constant 0 : index
    %13 = vector.load %arg2[%c1_19, %c0_20, %c0_21] : memref<3x64x64xbf16, #tpu.memory_space<vmem>>, vector<1x64x64xbf16>
    %14 = vector.shape_cast %13 : vector<1x64x64xbf16> to vector<64x64xbf16>
    %cst_22 = arith.constant dense<0.000000e+00> : vector<32x64xf32>
    %15 = tpu.matmul %12, %14, %cst_22 {dimension_numbers = #tpu.dot_dimension_numbers<[1], [0], [0], [1], [0, 0, 1, 1], [], []>} : vector<32x64xbf16>, vector<64x64xbf16>, vector<32x64xf32> -> vector<32x64xf32>
    %c0_23 = arith.constant 0 : index
    %c2 = arith.constant 2 : index
    %c0_24 = arith.constant 0 : index
    %16 = vector.load %arg8[%c0_23, %c2, %c0_24] : memref<2x18x64xbf16, #tpu.memory_space<vmem>>, vector<2x16x64xbf16>
    %17 = vector.shape_cast %16 : vector<2x16x64xbf16> to vector<32x64xbf16>
    %c2_25 = arith.constant 2 : index
    %c0_26 = arith.constant 0 : index
    %c0_27 = arith.constant 0 : index
    %18 = vector.load %arg2[%c2_25, %c0_26, %c0_27] : memref<3x64x64xbf16, #tpu.memory_space<vmem>>, vector<1x64x64xbf16>
    %19 = vector.shape_cast %18 : vector<1x64x64xbf16> to vector<64x64xbf16>
    %cst_28 = arith.constant dense<0.000000e+00> : vector<32x64xf32>
    %20 = tpu.matmul %17, %19, %cst_28 {dimension_numbers = #tpu.dot_dimension_numbers<[1], [0], [0], [1], [0, 0, 1, 1], [], []>} : vector<32x64xbf16>, vector<64x64xbf16>, vector<32x64xf32> -> vector<32x64xf32>
    %21 = arith.addf %10, %15 : vector<32x64xf32>
    %22 = arith.addf %21, %20 : vector<32x64xf32>
    %cst_29 = arith.constant dense<0.000000e+00> : vector<64xf32>
    %23 = vector.multi_reduction <add>, %22, %cst_29 [0] : vector<32x64xf32> to vector<64xf32>
    %24 = vector.shape_cast %23 : vector<64xf32> to vector<1x64xf32>
    %cst_30 = arith.constant dense<0.000000e+00> : vector<1x64xf32>
    %25 = tpu.matmul %24, %1, %cst_30 {dimension_numbers = #tpu.dot_dimension_numbers<[1], [0], [0], [1], [0, 0, 1, 1], [], []>} : vector<1x64xf32>, vector<64x64xf32>, vector<1x64xf32> -> vector<1x64xf32>
    %cst_31 = arith.constant 0.001953125 : f32
    %26 = vector.broadcast %cst_31 : f32 to vector<1x64xf32>
    %27 = arith.mulf %25, %26 : vector<1x64xf32>
    %28 = vector.broadcast %27 : vector<1x64xf32> to vector<32x64xf32>
    %29 = arith.subf %22, %28 : vector<32x64xf32>
    %30 = arith.mulf %29, %29 : vector<32x64xf32>
    %cst_32 = arith.constant dense<0.000000e+00> : vector<64xf32>
    %31 = vector.multi_reduction <add>, %30, %cst_32 [0] : vector<32x64xf32> to vector<64xf32>
    %32 = vector.shape_cast %31 : vector<64xf32> to vector<1x64xf32>
    %cst_33 = arith.constant dense<0.000000e+00> : vector<1x64xf32>
    %33 = tpu.matmul %32, %1, %cst_33 {dimension_numbers = #tpu.dot_dimension_numbers<[1], [0], [0], [1], [0, 0, 1, 1], [], []>} : vector<1x64xf32>, vector<64x64xf32>, vector<1x64xf32> -> vector<1x64xf32>
    %cst_34 = arith.constant 0.001953125 : f32
    %34 = vector.broadcast %cst_34 : f32 to vector<1x64xf32>
    %35 = arith.mulf %33, %34 : vector<1x64xf32>
    %c0_35 = arith.constant 0 : index
    %c0_36 = arith.constant 0 : index
    %36 = vector.load %arg4[%c0_35, %c0_36] : memref<2x64xf32, #tpu.memory_space<vmem>>, vector<1x64xf32>
    %cst_37 = arith.constant 9.99999974E-6 : f32
    %37 = vector.broadcast %cst_37 : f32 to vector<1x64xf32>
    %38 = arith.addf %35, %37 : vector<1x64xf32>
    %39 = math.rsqrt %38 : vector<1x64xf32>
    %40 = arith.mulf %36, %39 : vector<1x64xf32>
    %41 = vector.broadcast %40 : vector<1x64xf32> to vector<32x64xf32>
    %42 = arith.mulf %29, %41 : vector<32x64xf32>
    %c1_38 = arith.constant 1 : index
    %c0_39 = arith.constant 0 : index
    %43 = vector.load %arg4[%c1_38, %c0_39] : memref<2x64xf32, #tpu.memory_space<vmem>>, vector<1x64xf32>
    %44 = vector.broadcast %43 : vector<1x64xf32> to vector<32x64xf32>
    %45 = arith.addf %42, %44 : vector<32x64xf32>
    %cst_40 = arith.constant 0.000000e+00 : f32
    %46 = vector.broadcast %cst_40 : f32 to vector<32x64xf32>
    %47 = arith.maximumf %45, %46 : vector<32x64xf32>
    %48 = vector.shape_cast %47 : vector<32x64xf32> to vector<2x16x64xf32>
    %49 = arith.truncf %48 : vector<2x16x64xf32> to vector<2x16x64xbf16>
    %c0_41 = arith.constant 0 : index
    %c1_42 = arith.constant 1 : index
    %c0_43 = arith.constant 0 : index
    %50 = vector.load %arg8[%c0_41, %c1_42, %c0_43] : memref<2x18x64xbf16, #tpu.memory_space<vmem>>, vector<2x16x64xbf16>
    tpu.vector_store %arg8[%c0_41, %c1_42, %c0_43], %49 {strides = array<i32>} : memref<2x18x64xbf16, #tpu.memory_space<vmem>>, vector<2x16x64xbf16>,
    %c0_44 = arith.constant 0 : index
    %c0_45 = arith.constant 0 : index
    %c0_46 = arith.constant 0 : index
    %51 = vector.load %arg8[%c0_44, %c0_45, %c0_46] : memref<2x18x64xbf16, #tpu.memory_space<vmem>>, vector<2x16x64xbf16>
    %52 = vector.shape_cast %51 : vector<2x16x64xbf16> to vector<32x64xbf16>
    %c0_47 = arith.constant 0 : index
    %c0_48 = arith.constant 0 : index
    %c0_49 = arith.constant 0 : index
    %53 = vector.load %arg3[%c0_47, %c0_48, %c0_49] : memref<3x64x64xbf16, #tpu.memory_space<vmem>>, vector<1x64x64xbf16>
    %54 = vector.shape_cast %53 : vector<1x64x64xbf16> to vector<64x64xbf16>
    %cst_50 = arith.constant dense<0.000000e+00> : vector<32x64xf32>
    %55 = tpu.matmul %52, %54, %cst_50 {dimension_numbers = #tpu.dot_dimension_numbers<[1], [0], [0], [1], [0, 0, 1, 1], [], []>} : vector<32x64xbf16>, vector<64x64xbf16>, vector<32x64xf32> -> vector<32x64xf32>
    %c0_51 = arith.constant 0 : index
    %c1_52 = arith.constant 1 : index
    %c0_53 = arith.constant 0 : index
    %56 = vector.load %arg8[%c0_51, %c1_52, %c0_53] : memref<2x18x64xbf16, #tpu.memory_space<vmem>>, vector<2x16x64xbf16>
    %57 = vector.shape_cast %56 : vector<2x16x64xbf16> to vector<32x64xbf16>
    %c1_54 = arith.constant 1 : index
    %c0_55 = arith.constant 0 : index
    %c0_56 = arith.constant 0 : index
    %58 = vector.load %arg3[%c1_54, %c0_55, %c0_56] : memref<3x64x64xbf16, #tpu.memory_space<vmem>>, vector<1x64x64xbf16>
    %59 = vector.shape_cast %58 : vector<1x64x64xbf16> to vector<64x64xbf16>
    %cst_57 = arith.constant dense<0.000000e+00> : vector<32x64xf32>
    %60 = tpu.matmul %57, %59, %cst_57 {dimension_numbers = #tpu.dot_dimension_numbers<[1], [0], [0], [1], [0, 0, 1, 1], [], []>} : vector<32x64xbf16>, vector<64x64xbf16>, vector<32x64xf32> -> vector<32x64xf32>
    %c0_58 = arith.constant 0 : index
    %c2_59 = arith.constant 2 : index
    %c0_60 = arith.constant 0 : index
    %61 = vector.load %arg8[%c0_58, %c2_59, %c0_60] : memref<2x18x64xbf16, #tpu.memory_space<vmem>>, vector<2x16x64xbf16>
    %62 = vector.shape_cast %61 : vector<2x16x64xbf16> to vector<32x64xbf16>
    %c2_61 = arith.constant 2 : index
    %c0_62 = arith.constant 0 : index
    %c0_63 = arith.constant 0 : index
    %63 = vector.load %arg3[%c2_61, %c0_62, %c0_63] : memref<3x64x64xbf16, #tpu.memory_space<vmem>>, vector<1x64x64xbf16>
    %64 = vector.shape_cast %63 : vector<1x64x64xbf16> to vector<64x64xbf16>
    %cst_64 = arith.constant dense<0.000000e+00> : vector<32x64xf32>
    %65 = tpu.matmul %62, %64, %cst_64 {dimension_numbers = #tpu.dot_dimension_numbers<[1], [0], [0], [1], [0, 0, 1, 1], [], []>} : vector<32x64xbf16>, vector<64x64xbf16>, vector<32x64xf32> -> vector<32x64xf32>
    %66 = arith.addf %55, %60 : vector<32x64xf32>
    %67 = arith.addf %66, %65 : vector<32x64xf32>
    %cst_65 = arith.constant dense<0.000000e+00> : vector<64xf32>
    %68 = vector.multi_reduction <add>, %67, %cst_65 [0] : vector<32x64xf32> to vector<64xf32>
    %69 = vector.shape_cast %68 : vector<64xf32> to vector<1x64xf32>
    %cst_66 = arith.constant dense<0.000000e+00> : vector<1x64xf32>
    %70 = tpu.matmul %69, %1, %cst_66 {dimension_numbers = #tpu.dot_dimension_numbers<[1], [0], [0], [1], [0, 0, 1, 1], [], []>} : vector<1x64xf32>, vector<64x64xf32>, vector<1x64xf32> -> vector<1x64xf32>
    %cst_67 = arith.constant 0.001953125 : f32
    %71 = vector.broadcast %cst_67 : f32 to vector<1x64xf32>
    %72 = arith.mulf %70, %71 : vector<1x64xf32>
    %73 = vector.broadcast %72 : vector<1x64xf32> to vector<32x64xf32>
    %74 = arith.subf %67, %73 : vector<32x64xf32>
    %75 = arith.mulf %74, %74 : vector<32x64xf32>
    %cst_68 = arith.constant dense<0.000000e+00> : vector<64xf32>
    %76 = vector.multi_reduction <add>, %75, %cst_68 [0] : vector<32x64xf32> to vector<64xf32>
    %77 = vector.shape_cast %76 : vector<64xf32> to vector<1x64xf32>
    %cst_69 = arith.constant dense<0.000000e+00> : vector<1x64xf32>
    %78 = tpu.matmul %77, %1, %cst_69 {dimension_numbers = #tpu.dot_dimension_numbers<[1], [0], [0], [1], [0, 0, 1, 1], [], []>} : vector<1x64xf32>, vector<64x64xf32>, vector<1x64xf32> -> vector<1x64xf32>
    %cst_70 = arith.constant 0.001953125 : f32
    %79 = vector.broadcast %cst_70 : f32 to vector<1x64xf32>
    %80 = arith.mulf %78, %79 : vector<1x64xf32>
    %c0_71 = arith.constant 0 : index
    %c0_72 = arith.constant 0 : index
    %81 = vector.load %arg5[%c0_71, %c0_72] : memref<2x64xf32, #tpu.memory_space<vmem>>, vector<1x64xf32>
    %cst_73 = arith.constant 9.99999974E-6 : f32
    %82 = vector.broadcast %cst_73 : f32 to vector<1x64xf32>
    %83 = arith.addf %80, %82 : vector<1x64xf32>
    %84 = math.rsqrt %83 : vector<1x64xf32>
    %85 = arith.mulf %81, %84 : vector<1x64xf32>
    %86 = vector.broadcast %85 : vector<1x64xf32> to vector<32x64xf32>
    %87 = arith.mulf %74, %86 : vector<32x64xf32>
    %c1_74 = arith.constant 1 : index
    %c0_75 = arith.constant 0 : index
    %88 = vector.load %arg5[%c1_74, %c0_75] : memref<2x64xf32, #tpu.memory_space<vmem>>, vector<1x64xf32>
    %89 = vector.broadcast %88 : vector<1x64xf32> to vector<32x64xf32>
    %90 = arith.addf %87, %89 : vector<32x64xf32>
    %91 = vector.shape_cast %0 : vector<2x16x64xf32> to vector<32x64xf32>
    %92 = arith.addf %90, %91 : vector<32x64xf32>
    %cst_76 = arith.constant 0.000000e+00 : f32
    %93 = vector.broadcast %cst_76 : f32 to vector<32x64xf32>
    %94 = arith.maximumf %92, %93 : vector<32x64xf32>
    %95 = vector.shape_cast %94 : vector<32x64xf32> to vector<2x16x64xf32>
    %c0_77 = arith.constant 0 : index
    %c0_78 = arith.constant 0 : index
    %c0_79 = arith.constant 0 : index
    %96 = vector.load %arg7[%c0_77, %c0_78, %c0_79] : memref<2x16x64xf32, #tpu.memory_space<vmem>>, vector<2x16x64xf32>
    tpu.vector_store %arg7[%c0_77, %c0_78, %c0_79], %95 {strides = array<i32>} : memref<2x16x64xf32, #tpu.memory_space<vmem>>, vector<2x16x64xf32>,
    return
  }
  func.func @transform_0(%arg0: i32) -> (i32, i32, i32) {
    %c0_i32 = arith.constant 0 : i32
    %c0_i32_0 = arith.constant 0 : i32
    %c0_i32_1 = arith.constant 0 : i32
    %c0_i32_2 = arith.constant 0 : i32
    return %c0_i32, %c0_i32_0, %c0_i32_1 : i32, i32, i32
  }
  func.func @transform_1(%arg0: i32) -> (i32, i32, i32) {
    %c0_i32 = arith.constant 0 : i32
    %c0_i32_0 = arith.constant 0 : i32
    %c0_i32_1 = arith.constant 0 : i32
    %c0_i32_2 = arith.constant 0 : i32
    return %c0_i32, %c0_i32_0, %c0_i32_1 : i32, i32, i32
  }
  func.func @transform_2(%arg0: i32) -> (i32, i32, i32) {
    %c0_i32 = arith.constant 0 : i32
    %c0_i32_0 = arith.constant 0 : i32
    %c0_i32_1 = arith.constant 0 : i32
    %c0_i32_2 = arith.constant 0 : i32
    return %c0_i32, %c0_i32_0, %c0_i32_1 : i32, i32, i32
  }
  func.func @transform_3(%arg0: i32) -> (i32, i32) {
    %c0_i32 = arith.constant 0 : i32
    %c0_i32_0 = arith.constant 0 : i32
    %c0_i32_1 = arith.constant 0 : i32
    return %c0_i32, %c0_i32_0 : i32, i32
  }
  func.func @transform_4(%arg0: i32) -> (i32, i32) {
    %c0_i32 = arith.constant 0 : i32
    %c0_i32_0 = arith.constant 0 : i32
    %c0_i32_1 = arith.constant 0 : i32
    return %c0_i32, %c0_i32_0 : i32, i32
  }
  func.func @transform_5(%arg0: i32) -> (i32, i32) {
    %c0_i32 = arith.constant 0 : i32
    %c0_i32_0 = arith.constant 0 : i32
    %c0_i32_1 = arith.constant 0 : i32
    return %c0_i32, %c0_i32_0 : i32, i32
  }
  func.func @transform_6(%arg0: i32) -> (i32, i32, i32) {
    %c0_i32 = arith.constant 0 : i32
    %c0_i32_0 = arith.constant 0 : i32
    %c0_i32_1 = arith.constant 0 : i32
    %c0_i32_2 = arith.constant 0 : i32
    return %c0_i32, %c0_i32_0, %c0_i32_1 : i32, i32, i32
  }
}

</mosaic_0001>

<llo_original>
// kernel: tpu_custom_call.1
$region0: #{tpu_custom_call.1}
  #allocation0 [shape = 'u32[]', space=smem, size = 0x4, offset = 0x4, fixed_abs, tag = 'smem constant byte address 0x4 - core index']
  #allocation1 [shape = 'u32[144,128]{1,0:T(1,128)}', space=vmem, size = 0x12000, scoped, tag = 'internal scratch']
  #allocation2 [shape = 'bf16[2,18,64]{2,1,0:T(8,128)(2,1)}', space=vmem, size = 0x3000, scoped, tag = 'scratch operand']
  %s0 = inlined_call_operand.hbm [shape: f32[2,16,64], index: 0, kind: input, shape index: {}]
  %s1 = inlined_call_operand.hbm [shape: bf16[3,64,64], index: 1, kind: input, shape index: {}]
  %s2 = inlined_call_operand.hbm [shape: bf16[3,64,64], index: 2, kind: input, shape index: {}]
  %s3 = inlined_call_operand.vmem [shape: f32[2,64], index: 3, kind: input, shape index: {}]
  %s4 = inlined_call_operand.vmem [shape: f32[2,64], index: 4, kind: input, shape index: {}]
  %s5 = inlined_call_operand.hbm [shape: f32[64,64], index: 5, kind: input, shape index: {}]
  %s6 = inlined_call_operand.hbm [shape: f32[2,16,64], index: 6, kind: output, shape index: {}]
  %s7 = sld [smem:[#allocation0]]
  $region50: #{tpu_custom_call.1} parent=0
    _
  %s9 = ssub.s32 1, %s7
  %s10 = scalar_select 0, %s9, %s7
  $region1: #{tpu_custom_call.1} parent=0
    #allocation3 [shape = 'u8[16384]{0}', space=vmem, size = 0x4000, scoped, tag = 'input window, operand 0, single buffered']
    #allocation4 [shape = 's32[1]{0}', space=sflag, size = 0x4, scoped, tag = 'scoped memory for tpu_custom_call.1']
    #allocation5 [shape = 's32[1]{0}', space=sflag, size = 0x4, scoped, tag = 'scoped memory for tpu_custom_call.1']
    #allocation6 [shape = 'u8[49152]{0}', space=vmem, size = 0xc000, scoped, tag = 'input window, operand 1, single buffered']
    #allocation7 [shape = 's32[1]{0}', space=sflag, size = 0x4, scoped, tag = 'scoped memory for tpu_custom_call.1']
    #allocation8 [shape = 'u8[49152]{0}', space=vmem, size = 0xc000, scoped, tag = 'input window, operand 2, single buffered']
    #allocation9 [shape = 'u8[32768]{0}', space=vmem, size = 0x8000, scoped, tag = 'input window, operand 5, single buffered']
    #allocation10 [shape = 's32[1]{0}', space=sflag, size = 0x4, scoped, tag = 'scoped memory for tpu_custom_call.1']
    #allocation11 [shape = 'u8[16384]{0}', space=vmem, size = 0x4000, scoped, tag = 'output window, operand 0, single buffered']
    %11 = vsyncpa [#allocation4], 0
    %12 = vsyncpa [#allocation7], 0
    %13 = vsyncpa [#allocation10], 0
    %14 = vsyncpa [#allocation5], 0
    // Predicated region
    $region2: #{tpu_custom_call.1} parent=1 // pred_check
      _
    $region3: #{tpu_custom_call.1} parent=1 // pred_check_branch
      %16 = sbr.rel (0) target = $region5
    $region4: #{tpu_custom_call.1} parent=1 // pred_region
      %s18 = ssub.s32 512, 512
      %19 = vsyncadd [#allocation4], %s18
      %s20 = sshll.u32 [#allocation3], 4
      %s21 = int_to_ptr.vmem [resolvable:$true] %s20
      %26 = dma.hbm_to_vmem [thread:$0]  %s0, 512, %s21, [#allocation4], 128, 128, 8
    $region5: #{tpu_custom_call.1} parent=1 // pred_fallthru
      _
    // Predicated region
    $region6: #{tpu_custom_call.1} parent=1 // pred_check
      _
    $region7: #{tpu_custom_call.1} parent=1 // pred_check_branch
      %28 = sbr.rel (0) target = $region9
    $region8: #{tpu_custom_call.1} parent=1 // pred_region
      %s30 = ssub.s32 1536, 1536
      %31 = vsyncadd [#allocation7], %s30
      %s32 = sshll.u32 [#allocation6], 4
      %s33 = int_to_ptr.vmem [resolvable:$true] %s32
      %38 = dma.hbm_to_vmem [thread:$0]  %s1, 1536, %s33, [#allocation7], 64, 64, 4
    $region9: #{tpu_custom_call.1} parent=1 // pred_fallthru
      _
    // Predicated region
    $region10: #{tpu_custom_call.1} parent=1 // pred_check
      _
    $region11: #{tpu_custom_call.1} parent=1 // pred_check_branch
      %40 = sbr.rel (0) target = $region13
    $region12: #{tpu_custom_call.1} parent=1 // pred_region
      %s42 = ssub.s32 1536, 1536
      %43 = vsyncadd [#allocation7], %s42
      %s44 = sshll.u32 [#allocation8], 4
      %s45 = int_to_ptr.vmem [resolvable:$true] %s44
      %50 = dma.hbm_to_vmem [thread:$0]  %s2, 1536, %s45, [#allocation7], 64, 64, 4
    $region13: #{tpu_custom_call.1} parent=1 // pred_fallthru
      _
    // Predicated region
    $region14: #{tpu_custom_call.1} parent=1 // pred_check
      _
    $region15: #{tpu_custom_call.1} parent=1 // pred_check_branch
      %52 = sbr.rel (0) target = $region17
    $region16: #{tpu_custom_call.1} parent=1 // pred_region
      _
    $region17: #{tpu_custom_call.1} parent=1 // pred_fallthru
      _
    // Predicated region
    $region18: #{tpu_custom_call.1} parent=1 // pred_check
      _
    $region19: #{tpu_custom_call.1} parent=1 // pred_check_branch
      %54 = sbr.rel (0) target = $region21
    $region20: #{tpu_custom_call.1} parent=1 // pred_region
      _
    $region21: #{tpu_custom_call.1} parent=1 // pred_fallthru
      _
    // Predicated region
    $region22: #{tpu_custom_call.1} parent=1 // pred_check
      _
    $region23: #{tpu_custom_call.1} parent=1 // pred_check_branch
      %56 = sbr.rel (0) target = $region25
    $region24: #{tpu_custom_call.1} parent=1 // pred_region
      %s58 = ssub.s32 1024, 1024
      %59 = vsyncadd [#allocation10], %s58
      %s60 = sshll.u32 [#allocation9], 4
      %s61 = int_to_ptr.vmem [resolvable:$true] %s60
      %66 = dma.hbm_to_vmem [thread:$0]  %s5, 1024, %s61, [#allocation10], 128, 128, 8
    $region25: #{tpu_custom_call.1} parent=1 // pred_fallthru
      _
    // Predicated region
    $region26: #{tpu_custom_call.1} parent=1 // pred_check
      _
    $region27: #{tpu_custom_call.1} parent=1 // pred_check_branch
      %68 = sbr.rel (0) target = $region29
    $region28: #{tpu_custom_call.1} parent=1 // pred_region
      %69 = dma.done [#allocation4], 512
    $region29: #{tpu_custom_call.1} parent=1 // pred_fallthru
      _
    // Predicated region
    $region30: #{tpu_custom_call.1} parent=1 // pred_check
      _
    $region31: #{tpu_custom_call.1} parent=1 // pred_check_branch
      %71 = sbr.rel (0) target = $region33
    $region32: #{tpu_custom_call.1} parent=1 // pred_region
      %72 = dma.done [#allocation7], 1536
    $region33: #{tpu_custom_call.1} parent=1 // pred_fallthru
      _
    // Predicated region
    $region34: #{tpu_custom_call.1} parent=1 // pred_check
      _
    $region35: #{tpu_custom_call.1} parent=1 // pred_check_branch
      %74 = sbr.rel (0) target = $region37
    $region36: #{tpu_custom_call.1} parent=1 // pred_region
      %75 = dma.done [#allocation7], 1536
    $region37: #{tpu_custom_call.1} parent=1 // pred_fallthru
      _
    // Predicated region
    $region38: #{tpu_custom_call.1} parent=1 // pred_check
      _
    $region39: #{tpu_custom_call.1} parent=1 // pred_check_branch
      %77 = sbr.rel (0) target = $region41
    $region40: #{tpu_custom_call.1} parent=1 // pred_region
      %78 = dma.done [#allocation10], 1024
    $region41: #{tpu_custom_call.1} parent=1 // pred_fallthru
      _
    %v80 = vld [vmem:[#allocation3] sm:$0xff]
    %v81 = vld [vmem:[#allocation3 + $0x8] sm:$0xff]
    %v82 = vld [vmem:[#allocation3 + $0x10] sm:$0xff]
    %v83 = vld [vmem:[#allocation3 + $0x18] sm:$0xff]
    %v84 = vld [vmem:[#allocation9] sm:$0xff]
    %v85 = vld [vmem:[#allocation9 + $0x8] sm:$0xff]
    %v86 = vld [vmem:[#allocation9 + $0x10] sm:$0xff]
    %v87 = vld [vmem:[#allocation9 + $0x18] sm:$0xff]
    %v88 = vld [vmem:[#allocation9 + $0x20] sm:$0xff]
    %v89 = vld [vmem:[#allocation9 + $0x28] sm:$0xff]
    %v90 = vld [vmem:[#allocation9 + $0x30] sm:$0xff]
    %v91 = vld [vmem:[#allocation9 + $0x38] sm:$0xff]
    %vm92 = vcmask 519168
    %93 = vst.msk [vmem:[#allocation2] sm:$0xf] %vm92, 0
    %94 = vst.msk [vmem:[#allocation2 + $0x4] sm:$0xf] %vm92, 0
    %vm95 = vcmask 516096
    %96 = vst.msk [vmem:[#allocation2 + $0x8] sm:$0x1] %vm95, 0
    %97 = vst.msk [vmem:[#allocation2 + $0xc] sm:$0xf] %vm92, 0
    %98 = vst.msk [vmem:[#allocation2 + $0x10] sm:$0xf] %vm92, 0
    %99 = vst.msk [vmem:[#allocation2 + $0x14] sm:$0x1] %vm95, 0
    %v100 = vpack.c.bf16 %v81, %v80
    %v101 = vpack.c.bf16 %v83, %v82
    %v104 = vunpack.c.l.b16 %v100
    %v105 = vunpack.c.h.b16 %v100
    %v106 = vunpack.c.l.b16 %v101
    %v107 = vunpack.c.h.b16 %v101
    %v108 = vpack.c.b16 %v104, %v104
    %v109 = vpack.c.b16 %v105, %v105
    %v110 = vpack.c.b16 %v106, %v106
    %v111 = vpack.c.b16 %v107, %v107
    %vm112 = vsmask.f32 256
    %vm113 = vsmask.f32 4368
    %vm114 = vmor %vm112, %vm113
    %v116 = vshrl.u32 %v108, 16
    %v118 = vrot.slane %v116, 7
    %v119 = vshll.u32 %v108, 16
    %v121 = vor.u32 %v118, %v119
    %v122 = vrot.slane %v118, 4
    %v124 = vshrl.u32 %v109, 16
    %v126 = vrot.slane %v124, 7
    %v127 = vshll.u32 %v109, 16
    %v129 = vor.u32 %v126, %v127
    %v130 = vsel %vm114, %v122, %v129
    %v131 = vrot.slane %v126, 4
    %v133 = vshrl.u32 %v110, 16
    %v135 = vrot.slane %v133, 7
    %v136 = vshll.u32 %v110, 16
    %v138 = vor.u32 %v135, %v136
    %v139 = vrot.slane %v135, 4
    %v141 = vshrl.u32 %v111, 16
    %v143 = vrot.slane %v141, 7
    %v144 = vshll.u32 %v111, 16
    %v146 = vor.u32 %v143, %v144
    %v147 = vsel %vm114, %v139, %v146
    %v148 = vrot.slane %v143, 4
    %vm155 = vcmask 519168
    %vm156 = vsmask.f32 7938
    %vm157 = vmand %vm155, %vm156
    %v158 = vld [vmem:[#allocation2] sm:$0xf]
    %v159 = vsel %vm157, %v121, %v158
    %160 = vst [vmem:[#allocation2] sm:$0xf] %v159
    %161 = vst.msk [vmem:[#allocation2 + $0x4] sm:$0xf] %vm92, %v130
    %vm162 = vcmask 516096
    %vm163 = vmand %vm162, %vm112
    %v164 = vld [vmem:[#allocation2 + $0x8] sm:$0x1]
    %v165 = vsel %vm163, %v131, %v164
    %166 = vst [vmem:[#allocation2 + $0x8] sm:$0x1] %v165
    %v167 = vld [vmem:[#allocation2 + $0xc] sm:$0xf]
    %v168 = vsel %vm157, %v138, %v167
    %169 = vst [vmem:[#allocation2 + $0xc] sm:$0xf] %v168
    %170 = vst.msk [vmem:[#allocation2 + $0x10] sm:$0xf] %vm92, %v147
    %v171 = vld [vmem:[#allocation2 + $0x14] sm:$0x1]
    %v172 = vsel %vm163, %v148, %v171
    %173 = vst [vmem:[#allocation2 + $0x14] sm:$0x1] %v172
    %v174 = vld [vmem:[#allocation2] sm:$0xf]
    %v175 = vld [vmem:[#allocation2 + $0x4] sm:$0xf]
    %v176 = vld [vmem:[#allocation2 + $0xc] sm:$0xf]
    %v177 = vld [vmem:[#allocation2 + $0x10] sm:$0xf]
    %v178 = vld [vmem:[#allocation6] sm:$0xf]
    %v179 = vld [vmem:[#allocation6 + $0x4] sm:$0xf]
    %v180 = vld [vmem:[#allocation6 + $0x8] sm:$0xf]
    %v181 = vld [vmem:[#allocation6 + $0xc] sm:$0xf]
    %v182 = vld [vmem:[#allocation6 + $0x10] sm:$0xf]
    %v183 = vld [vmem:[#allocation6 + $0x14] sm:$0xf]
    %v184 = vld [vmem:[#allocation6 + $0x18] sm:$0xf]
    %v185 = vld [vmem:[#allocation6 + $0x1c] sm:$0xf]
    %v186 = vld [vmem:[#allocation2 + $0x8] sm:$0x1]
    %v187 = vld [vmem:[#allocation2 + $0x14] sm:$0x1]
    %vm188 = vsmask.f32 3328
    %vm189 = vsmask.f32 7440
    %vm190 = vmor %vm188, %vm189
    %v192 = vshrl.u32 %v174, 16
    %v194 = vrot.slane %v192, 4
    %v195 = vshll.u32 %v174, 16
    %v197 = vrot.slane %v195, 5
    %v198 = vor.u32 %v194, %v197
    %v199 = vrot.slane %v198, 4
    %v201 = vshll.u32 %v175, 16
    %v203 = vrot.slane %v201, 5
    %v204 = vsel %vm190, %v199, %v203
    %v205 = vshrl.u32 %v175, 16
    %v207 = vrot.slane %v205, 4
    %v208 = vor.u32 %v207, %v203
    %v209 = vrot.slane %v208, 4
    %v211 = vshll.u32 %v186, 16
    %v213 = vrot.slane %v211, 5
    %v214 = vsel %vm190, %v209, %v213
    %v216 = vshrl.u32 %v176, 16
    %v218 = vrot.slane %v216, 4
    %v219 = vshll.u32 %v176, 16
    %v221 = vrot.slane %v219, 5
    %v222 = vor.u32 %v218, %v221
    %v223 = vrot.slane %v222, 4
    %v225 = vshll.u32 %v177, 16
    %v227 = vrot.slane %v225, 5
    %v228 = vsel %vm190, %v223, %v227
    %v229 = vshrl.u32 %v177, 16
    %v231 = vrot.slane %v229, 4
    %v232 = vor.u32 %v231, %v227
    %v233 = vrot.slane %v232, 4
    %v235 = vshll.u32 %v187, 16
    %v237 = vrot.slane %v235, 5
    %v238 = vsel %vm190, %v233, %v237
    %s239 = scalar_lea.vmem [#allocation6], 32
    %v240 = vld [vmem:[%s239] sm:$0xf]
    %v241 = vld [vmem:[%s239 + $0x4] sm:$0xf]
    %v242 = vld [vmem:[%s239 + $0x8] sm:$0xf]
    %v243 = vld [vmem:[%s239 + $0xc] sm:$0xf]
    %v244 = vld [vmem:[%s239 + $0x10] sm:$0xf]
    %v245 = vld [vmem:[%s239 + $0x14] sm:$0xf]
    %v246 = vld [vmem:[%s239 + $0x18] sm:$0xf]
    %v247 = vld [vmem:[%s239 + $0x1c] sm:$0xf]
    %v248 = vunpack.c.l.b16 %v204
    %v249 = vunpack.c.l.b16 %v214
    %v250 = vunpack.c.l.b16 %v228
    %v251 = vunpack.c.l.b16 %v238
    %v252 = vpack.c.b16 %v249, %v248
    %v253 = vpack.c.b16 %v251, %v250
    %v262 = vunpack.c.l.b16 %v240
    %v263 = vunpack.c.l.b16 %v241
    %v264 = vunpack.c.l.b16 %v242
    %v265 = vunpack.c.l.b16 %v243
    %v266 = vunpack.c.l.b16 %v244
    %v267 = vunpack.c.l.b16 %v245
    %v268 = vunpack.c.l.b16 %v246
    %v269 = vunpack.c.l.b16 %v247
    %v270 = vpack.c.b16 %v263, %v262
    %v271 = vpack.c.b16 %v265, %v264
    %v272 = vpack.c.b16 %v267, %v266
    %v273 = vpack.c.b16 %v269, %v268
    %vm278 = vcmask 523264
    %v280 = vsel %vm278, %v252, 0
    %v283 = vsel %vm278, %v253, 0
    %285 = vmatprep.subr.bf16.mxu0 0
    %286 = vmatpush1.bf16.msra.mxu0 0
    %287 = vmatprep.subr.bf16.mxu0 0
    %288 = vmatpush1.bf16.msra.mxu0 0
    %289 = vmatprep.subr.bf16.mxu0 0
    %290 = vmatpush1.bf16.msra.mxu0 0
    %291 = vmatprep.subr.bf16.mxu0 0
    %292 = vmatpush1.bf16.msra.mxu0 0
    %293 = vmatprep.subr.bf16.mxu0 0
    %294 = vmatpush1.bf16.msra.mxu0 %v273
    %295 = vmatprep.subr.bf16.mxu0 0
    %296 = vmatpush1.bf16.msra.mxu0 %v272
    %297 = vmatprep.subr.bf16.mxu0 0
    %298 = vmatpush1.bf16.msra.mxu0 %v271
    %299 = vmatprep.subr.bf16.mxu0 0
    %300 = vmatpush1.bf16.msra.mxu0 %v270
    %301 = vmatprep.subr.bf16.mxu0 0
    %302 = vmatpush2.bf16.msra.mxu0 0
    %303 = vmatprep.subr.bf16.mxu0 0
    %304 = vmatpush2.bf16.msra.mxu0 0
    %305 = vmatprep.subr.bf16.mxu0 0
    %306 = vmatpush2.bf16.msra.mxu0 0
    %307 = vmatprep.subr.bf16.mxu0 0
    %308 = vmatpush2.bf16.msra.mxu0 0
    %309 = vmatprep.subr.bf16.mxu0 0
    %310 = vmatpush2.bf16.msra.mxu0 0
    %311 = vmatprep.subr.bf16.mxu0 0
    %312 = vmatpush2.bf16.msra.mxu0 0
    %313 = vmatprep.subr.bf16.mxu0 0
    %314 = vmatpush2.bf16.msra.mxu0 0
    %315 = vmatprep.subr.bf16.mxu0 0
    %316 = vmatpush2.bf16.msra.mxu0 0
    %317 = vmatprep.mubr.bf16.mxu0 0
    %318 = vmatmul.mubr.bf16.gmra.mxu0 %v280
    %v319 = vpop.f32.mrf.mxu0
    %v320 = vadd.f32 0.0, %v319
    %v321 = vpop.f32.mrf.mxu0
    %v322 = vpop.f32.mrf.mxu0
    %v323 = vadd.f32 0.0, %v322
    %v324 = vpop.f32.mrf.mxu0
    %325 = vmatprep.mubr.bf16.mxu0 0
    %326 = vmatmul.mubr.bf16.gmra.mxu0 %v283
    %v327 = vpop.f32.mrf.mxu0
    %v328 = vadd.f32 0.0, %v327
    %v329 = vpop.f32.mrf.mxu0
    %v330 = vpop.f32.mrf.mxu0
    %v331 = vadd.f32 0.0, %v330
    %v332 = vpop.f32.mrf.mxu0
    %333 = vdwg.mxu0
    %v334 = vld [vmem:[#allocation2] sm:$0xe]
    %v335 = vld [vmem:[#allocation2 + $0xc] sm:$0xe]
    %vm342 = vcmask 1042432
    %vm343 = vcmask 1046532
    %vm344 = vmor %vm342, %vm343
    %v345 = vrot.slane %v334, 5
    %v346 = vrot.slane %v345, 4
    %v347 = vrot.slane %v175, 5
    %v348 = vsel %vm344, %v346, %v347
    %v349 = vrot.slane %v347, 4
    %v350 = vrot.slane %v186, 5
    %v351 = vsel %vm344, %v349, %v350
    %v352 = vrot.slane %v335, 5
    %v353 = vrot.slane %v352, 4
    %v354 = vrot.slane %v177, 5
    %v355 = vsel %vm344, %v353, %v354
    %v356 = vrot.slane %v354, 4
    %v357 = vrot.slane %v187, 5
    %v358 = vsel %vm344, %v356, %v357
    %s359 = scalar_lea.vmem [#allocation6], 64
    %v360 = vld [vmem:[%s359] sm:$0xf]
    %v361 = vld [vmem:[%s359 + $0x4] sm:$0xf]
    %v362 = vld [vmem:[%s359 + $0x8] sm:$0xf]
    %v363 = vld [vmem:[%s359 + $0xc] sm:$0xf]
    %v364 = vld [vmem:[%s359 + $0x10] sm:$0xf]
    %v365 = vld [vmem:[%s359 + $0x14] sm:$0xf]
    %v366 = vld [vmem:[%s359 + $0x18] sm:$0xf]
    %v367 = vld [vmem:[%s359 + $0x1c] sm:$0xf]
    %v368 = vunpack.c.l.b16 %v348
    %v369 = vunpack.c.l.b16 %v351
    %v370 = vunpack.c.l.b16 %v355
    %v371 = vunpack.c.l.b16 %v358
    %v372 = vpack.c.b16 %v369, %v368
    %v373 = vpack.c.b16 %v371, %v370
    %v382 = vunpack.c.l.b16 %v360
    %v383 = vunpack.c.l.b16 %v361
    %v384 = vunpack.c.l.b16 %v362
    %v385 = vunpack.c.l.b16 %v363
    %v386 = vunpack.c.l.b16 %v364
    %v387 = vunpack.c.l.b16 %v365
    %v388 = vunpack.c.l.b16 %v366
    %v389 = vunpack.c.l.b16 %v367
    %v390 = vpack.c.b16 %v383, %v382
    %v391 = vpack.c.b16 %v385, %v384
    %v392 = vpack.c.b16 %v387, %v386
    %v393 = vpack.c.b16 %v389, %v388
    %v399 = vsel %vm278, %v372, 0
    %v402 = vsel %vm278, %v373, 0
    %404 = vmatprep.subr.bf16.mxu0 0
    %405 = vmatpush1.bf16.msra.mxu0 0
    %406 = vmatprep.subr.bf16.mxu0 0
    %407 = vmatpush1.bf16.msra.mxu0 0
    %408 = vmatprep.subr.bf16.mxu0 0
    %409 = vmatpush1.bf16.msra.mxu0 0
    %410 = vmatprep.subr.bf16.mxu0 0
    %411 = vmatpush1.bf16.msra.mxu0 0
    %412 = vmatprep.subr.bf16.mxu0 0
    %413 = vmatpush1.bf16.msra.mxu0 %v393
    %414 = vmatprep.subr.bf16.mxu0 0
    %415 = vmatpush1.bf16.msra.mxu0 %v392
    %416 = vmatprep.subr.bf16.mxu0 0
    %417 = vmatpush1.bf16.msra.mxu0 %v391
    %418 = vmatprep.subr.bf16.mxu0 0
    %419 = vmatpush1.bf16.msra.mxu0 %v390
    %420 = vmatprep.subr.bf16.mxu0 0
    %421 = vmatpush2.bf16.msra.mxu0 0
    %422 = vmatprep.subr.bf16.mxu0 0
    %423 = vmatpush2.bf16.msra.mxu0 0
    %424 = vmatprep.subr.bf16.mxu0 0
    %425 = vmatpush2.bf16.msra.mxu0 0
    %426 = vmatprep.subr.bf16.mxu0 0
    %427 = vmatpush2.bf16.msra.mxu0 0
    %428 = vmatprep.subr.bf16.mxu0 0
    %429 = vmatpush2.bf16.msra.mxu0 0
    %430 = vmatprep.subr.bf16.mxu0 0
    %431 = vmatpush2.bf16.msra.mxu0 0
    %432 = vmatprep.subr.bf16.mxu0 0
    %433 = vmatpush2.bf16.msra.mxu0 0
    %434 = vmatprep.subr.bf16.mxu0 0
    %435 = vmatpush2.bf16.msra.mxu0 0
    %436 = vmatprep.mubr.bf16.mxu0 0
    %437 = vmatmul.mubr.bf16.gmra.mxu0 %v399
    %v438 = vpop.f32.mrf.mxu0
    %v439 = vadd.f32 0.0, %v438
    %v440 = vpop.f32.mrf.mxu0
    %v441 = vpop.f32.mrf.mxu0
    %v442 = vadd.f32 0.0, %v441
    %v443 = vpop.f32.mrf.mxu0
    %444 = vmatprep.mubr.bf16.mxu0 0
    %445 = vmatmul.mubr.bf16.gmra.mxu0 %v402
    %v446 = vpop.f32.mrf.mxu0
    %v447 = vadd.f32 0.0, %v446
    %v448 = vpop.f32.mrf.mxu0
    %v449 = vpop.f32.mrf.mxu0
    %v450 = vadd.f32 0.0, %v449
    %v451 = vpop.f32.mrf.mxu0
    %452 = vdwg.mxu0
    %v455 = vunpack.c.l.b16 %v174
    %v456 = vunpack.c.l.b16 %v175
    %v457 = vunpack.c.l.b16 %v176
    %v458 = vunpack.c.l.b16 %v177
    %v459 = vpack.c.b16 %v456, %v455
    %v460 = vpack.c.b16 %v458, %v457
    %v469 = vunpack.c.l.b16 %v178
    %v470 = vunpack.c.l.b16 %v179
    %v471 = vunpack.c.l.b16 %v180
    %v472 = vunpack.c.l.b16 %v181
    %v473 = vunpack.c.l.b16 %v182
    %v474 = vunpack.c.l.b16 %v183
    %v475 = vunpack.c.l.b16 %v184
    %v476 = vunpack.c.l.b16 %v185
    %v477 = vpack.c.b16 %v470, %v469
    %v478 = vpack.c.b16 %v472, %v471
    %v479 = vpack.c.b16 %v474, %v473
    %v480 = vpack.c.b16 %v476, %v475
    %v486 = vsel %vm278, %v459, 0
    %v489 = vsel %vm278, %v460, 0
    %491 = vmatprep.subr.bf16.mxu0 0
    %492 = vmatpush1.bf16.msra.mxu0 0
    %493 = vmatprep.subr.bf16.mxu0 0
    %494 = vmatpush1.bf16.msra.mxu0 0
    %495 = vmatprep.subr.bf16.mxu0 0
    %496 = vmatpush1.bf16.msra.mxu0 0
    %497 = vmatprep.subr.bf16.mxu0 0
    %498 = vmatpush1.bf16.msra.mxu0 0
    %499 = vmatprep.subr.bf16.mxu0 0
    %500 = vmatpush1.bf16.msra.mxu0 %v480
    %501 = vmatprep.subr.bf16.mxu0 0
    %502 = vmatpush1.bf16.msra.mxu0 %v479
    %503 = vmatprep.subr.bf16.mxu0 0
    %504 = vmatpush1.bf16.msra.mxu0 %v478
    %505 = vmatprep.subr.bf16.mxu0 0
    %506 = vmatpush1.bf16.msra.mxu0 %v477
    %507 = vmatprep.subr.bf16.mxu0 0
    %508 = vmatpush2.bf16.msra.mxu0 0
    %509 = vmatprep.subr.bf16.mxu0 0
    %510 = vmatpush2.bf16.msra.mxu0 0
    %511 = vmatprep.subr.bf16.mxu0 0
    %512 = vmatpush2.bf16.msra.mxu0 0
    %513 = vmatprep.subr.bf16.mxu0 0
    %514 = vmatpush2.bf16.msra.mxu0 0
    %515 = vmatprep.subr.bf16.mxu0 0
    %516 = vmatpush2.bf16.msra.mxu0 0
    %517 = vmatprep.subr.bf16.mxu0 0
    %518 = vmatpush2.bf16.msra.mxu0 0
    %519 = vmatprep.subr.bf16.mxu0 0
    %520 = vmatpush2.bf16.msra.mxu0 0
    %521 = vmatprep.subr.bf16.mxu0 0
    %522 = vmatpush2.bf16.msra.mxu0 0
    %523 = vmatprep.mubr.bf16.mxu0 0
    %524 = vmatmul.mubr.bf16.gmra.mxu0 %v486
    %v525 = vpop.f32.mrf.mxu0
    %v526 = vadd.f32 %v320, %v525
    %v527 = vpop.f32.mrf.mxu0
    %v528 = vpop.f32.mrf.mxu0
    %v529 = vadd.f32 %v323, %v528
    %v530 = vpop.f32.mrf.mxu0
    %531 = vmatprep.mubr.bf16.mxu0 0
    %532 = vmatmul.mubr.bf16.gmra.mxu0 %v489
    %v533 = vpop.f32.mrf.mxu0
    %v534 = vadd.f32 %v328, %v533
    %v535 = vpop.f32.mrf.mxu0
    %v536 = vpop.f32.mrf.mxu0
    %v537 = vadd.f32 %v331, %v536
    %v538 = vpop.f32.mrf.mxu0
    %539 = vdwg.mxu0
    %v540 = vadd.f32 %v526, %v439
    %v541 = vadd.f32 %v529, %v442
    %v542 = vadd.f32 %v534, %v447
    %v543 = vadd.f32 %v537, %v450
    %v544 = vsel %vm278, %v540, 0.0
    %v545 = vsel %vm278, %v541, 0.0
    %v546 = vadd.f32 %v544, %v545
    %v547 = vsel %vm278, %v542, 0.0
    %v548 = vadd.f32 %v546, %v547
    %v549 = vsel %vm278, %v543, 0.0
    %v550 = vadd.f32 %v548, %v549
    %v551 = vrot.slane %v550, 4
    %v552 = vadd.f32 %v550, %v551
    %v553 = vrot.slane %v552, 2
    %v554 = vadd.f32 %v552, %v553
    %v555 = vrot.slane %v554, 1
    %v556 = vadd.f32 %v554, %v555
    %v558 = vsel %vm278, %v556, 0
    %560 = vmatprep.subr.mxu0 0.0
    %561 = vmatpush1.msra.mxu0 0.0
    %562 = vmatprep.subr.mxu0 0.0
    %563 = vmatpush1.msra.mxu0 0.0
    %564 = vmatprep.subr.mxu0 0.0
    %565 = vmatpush1.msra.mxu0 0.0
    %566 = vmatprep.subr.mxu0 0.0
    %567 = vmatpush1.msra.mxu0 0.0
    %568 = vmatprep.subr.mxu0 0.0
    %569 = vmatpush1.msra.mxu0 0.0
    %570 = vmatprep.subr.mxu0 0.0
    %571 = vmatpush1.msra.mxu0 0.0
    %572 = vmatprep.subr.mxu0 0.0
    %573 = vmatpush1.msra.mxu0 0.0
    %574 = vmatprep.subr.mxu0 0.0
    %575 = vmatpush1.msra.mxu0 0.0
    %576 = vmatprep.subr.mxu0 0.0
    %577 = vmatpush1.msra.mxu0 %v91
    %578 = vmatprep.subr.mxu0 0.0
    %579 = vmatpush1.msra.mxu0 %v90
    %580 = vmatprep.subr.mxu0 0.0
    %581 = vmatpush1.msra.mxu0 %v89
    %582 = vmatprep.subr.mxu0 0.0
    %583 = vmatpush1.msra.mxu0 %v88
    %584 = vmatprep.subr.mxu0 0.0
    %585 = vmatpush1.msra.mxu0 %v87
    %586 = vmatprep.subr.mxu0 0.0
    %587 = vmatpush1.msra.mxu0 %v86
    %588 = vmatprep.subr.mxu0 0.0
    %589 = vmatpush1.msra.mxu0 %v85
    %590 = vmatprep.subr.mxu0 0.0
    %591 = vmatpush1.msra.mxu0 %v84
    %592 = vmatprep.subr.mxu0 0.0
    %593 = vmatpush2.msra.mxu0 0.0
    %594 = vmatprep.subr.mxu0 0.0
    %595 = vmatpush2.msra.mxu0 0.0
    %596 = vmatprep.subr.mxu0 0.0
    %597 = vmatpush2.msra.mxu0 0.0
    %598 = vmatprep.subr.mxu0 0.0
    %599 = vmatpush2.msra.mxu0 0.0
    %600 = vmatprep.subr.mxu0 0.0
    %601 = vmatpush2.msra.mxu0 0.0
    %602 = vmatprep.subr.mxu0 0.0
    %603 = vmatpush2.msra.mxu0 0.0
    %604 = vmatprep.subr.mxu0 0.0
    %605 = vmatpush2.msra.mxu0 0.0
    %606 = vmatprep.subr.mxu0 0.0
    %607 = vmatpush2.msra.mxu0 0.0
    %608 = vmatprep.subr.mxu0 0.0
    %609 = vmatpush2.msra.mxu0 0.0
    %610 = vmatprep.subr.mxu0 0.0
    %611 = vmatpush2.msra.mxu0 0.0
    %612 = vmatprep.subr.mxu0 0.0
    %613 = vmatpush2.msra.mxu0 0.0
    %614 = vmatprep.subr.mxu0 0.0
    %615 = vmatpush2.msra.mxu0 0.0
    %616 = vmatprep.subr.mxu0 0.0
    %617 = vmatpush2.msra.mxu0 0.0
    %618 = vmatprep.subr.mxu0 0.0
    %619 = vmatpush2.msra.mxu0 0.0
    %620 = vmatprep.subr.mxu0 0.0
    %621 = vmatpush2.msra.mxu0 0.0
    %622 = vmatprep.subr.mxu0 0.0
    %623 = vmatpush2.msra.mxu0 0.0
    %624 = vmatprep.mubr.f32.mxu0 0.0
    %625 = vmatmul.mubr.f32.gmra.mxu0 %v558
    %v626 = vpop.f32.mrf.mxu0
    %v627 = vadd.f32 0.0, %v626
    %v628 = vpop.f32.mrf.mxu0
    %629 = vdwg.mxu0
    %v630 = vmul.f32 %v627, 0.001953125
    %v631 = vlaneseq
    %v632 = vshrl.u32 %v631, 7
    %v633 = vsub.s32 0, %v632
    %v634 = vrot.slane %v630, %v633
    %v635 = vsub.f32 %v540, %v634
    %v636 = vsub.f32 %v541, %v634
    %v637 = vsub.f32 %v542, %v634
    %v638 = vsub.f32 %v543, %v634
    %v639 = vmul.f32 %v635, %v635
    %v640 = vmul.f32 %v636, %v636
    %v641 = vmul.f32 %v637, %v637
    %v642 = vmul.f32 %v638, %v638
    %v643 = vsel %vm278, %v639, 0.0
    %v644 = vsel %vm278, %v640, 0.0
    %v645 = vadd.f32 %v643, %v644
    %v646 = vsel %vm278, %v641, 0.0
    %v647 = vadd.f32 %v645, %v646
    %v648 = vsel %vm278, %v642, 0.0
    %v649 = vadd.f32 %v647, %v648
    %v650 = vrot.slane %v649, 4
    %v651 = vadd.f32 %v649, %v650
    %v652 = vrot.slane %v651, 2
    %v653 = vadd.f32 %v651, %v652
    %v654 = vrot.slane %v653, 1
    %v655 = vadd.f32 %v653, %v654
    %v657 = vsel %vm278, %v655, 0
    %659 = vmatprep.subr.mxu0 0.0
    %660 = vmatpush1.msra.mxu0 0.0
    %661 = vmatprep.subr.mxu0 0.0
    %662 = vmatpush1.msra.mxu0 0.0
    %663 = vmatprep.subr.mxu0 0.0
    %664 = vmatpush1.msra.mxu0 0.0
    %665 = vmatprep.subr.mxu0 0.0
    %666 = vmatpush1.msra.mxu0 0.0
    %667 = vmatprep.subr.mxu0 0.0
    %668 = vmatpush1.msra.mxu0 0.0
    %669 = vmatprep.subr.mxu0 0.0
    %670 = vmatpush1.msra.mxu0 0.0
    %671 = vmatprep.subr.mxu0 0.0
    %672 = vmatpush1.msra.mxu0 0.0
    %673 = vmatprep.subr.mxu0 0.0
    %674 = vmatpush1.msra.mxu0 0.0
    %675 = vmatprep.subr.mxu0 0.0
    %676 = vmatpush1.msra.mxu0 %v91
    %677 = vmatprep.subr.mxu0 0.0
    %678 = vmatpush1.msra.mxu0 %v90
    %679 = vmatprep.subr.mxu0 0.0
    %680 = vmatpush1.msra.mxu0 %v89
    %681 = vmatprep.subr.mxu0 0.0
    %682 = vmatpush1.msra.mxu0 %v88
    %683 = vmatprep.subr.mxu0 0.0
    %684 = vmatpush1.msra.mxu0 %v87
    %685 = vmatprep.subr.mxu0 0.0
    %686 = vmatpush1.msra.mxu0 %v86
    %687 = vmatprep.subr.mxu0 0.0
    %688 = vmatpush1.msra.mxu0 %v85
    %689 = vmatprep.subr.mxu0 0.0
    %690 = vmatpush1.msra.mxu0 %v84
    %691 = vmatprep.subr.mxu0 0.0
    %692 = vmatpush2.msra.mxu0 0.0
    %693 = vmatprep.subr.mxu0 0.0
    %694 = vmatpush2.msra.mxu0 0.0
    %695 = vmatprep.subr.mxu0 0.0
    %696 = vmatpush2.msra.mxu0 0.0
    %697 = vmatprep.subr.mxu0 0.0
    %698 = vmatpush2.msra.mxu0 0.0
    %699 = vmatprep.subr.mxu0 0.0
    %700 = vmatpush2.msra.mxu0 0.0
    %701 = vmatprep.subr.mxu0 0.0
    %702 = vmatpush2.msra.mxu0 0.0
    %703 = vmatprep.subr.mxu0 0.0
    %704 = vmatpush2.msra.mxu0 0.0
    %705 = vmatprep.subr.mxu0 0.0
    %706 = vmatpush2.msra.mxu0 0.0
    %707 = vmatprep.subr.mxu0 0.0
    %708 = vmatpush2.msra.mxu0 0.0
    %709 = vmatprep.subr.mxu0 0.0
    %710 = vmatpush2.msra.mxu0 0.0
    %711 = vmatprep.subr.mxu0 0.0
    %712 = vmatpush2.msra.mxu0 0.0
    %713 = vmatprep.subr.mxu0 0.0
    %714 = vmatpush2.msra.mxu0 0.0
    %715 = vmatprep.subr.mxu0 0.0
    %716 = vmatpush2.msra.mxu0 0.0
    %717 = vmatprep.subr.mxu0 0.0
    %718 = vmatpush2.msra.mxu0 0.0
    %719 = vmatprep.subr.mxu0 0.0
    %720 = vmatpush2.msra.mxu0 0.0
    %721 = vmatprep.subr.mxu0 0.0
    %722 = vmatpush2.msra.mxu0 0.0
    %723 = vmatprep.mubr.f32.mxu0 0.0
    %724 = vmatmul.mubr.f32.gmra.mxu0 %v657
    %v725 = vpop.f32.mrf.mxu0
    %v726 = vadd.f32 0.0, %v725
    %v727 = vpop.f32.mrf.mxu0
    %728 = vdwg.mxu0
    %v729 = vmul.f32 %v726, 0.001953125
    %v730 = vld [vmem:[%s3] sm:$0x1]
    %v731 = vadd.f32 %v729, 1e-05
    %v732 = vrsqrt.pop %v731
    %v733 = vmul.f32 %v730, %v732
    %v734 = vlaneseq
    %v735 = vshrl.u32 %v734, 7
    %v736 = vsub.s32 0, %v735
    %v737 = vrot.slane %v733, %v736
    %v738 = vmul.f32 %v635, %v737
    %v739 = vmul.f32 %v636, %v737
    %v740 = vmul.f32 %v637, %v737
    %v741 = vmul.f32 %v638, %v737
    %v742 = vld [vmem:[%s3 + $0x1] sm:$0x1]
    %v743 = vlaneseq
    %v744 = vshrl.u32 %v743, 7
    %v745 = vsub.s32 0, %v744
    %v746 = vrot.slane %v742, %v745
    %v747 = vadd.f32 %v738, %v746
    %v748 = vadd.f32 %v739, %v746
    %v749 = vadd.f32 %v740, %v746
    %v750 = vadd.f32 %v741, %v746
    %v751 = vmax.f32 %v747, 0.0
    %v752 = vmax.f32 %v748, 0.0
    %v753 = vmax.f32 %v749, 0.0
    %v754 = vmax.f32 %v750, 0.0
    %v755 = vpack.c.bf16 %v752, %v751
    %v756 = vpack.c.bf16 %v754, %v753
    %v759 = vunpack.c.l.b16 %v755
    %v760 = vunpack.c.h.b16 %v755
    %v761 = vunpack.c.l.b16 %v756
    %v762 = vunpack.c.h.b16 %v756
    %v763 = vpack.c.b16 %v759, %v759
    %v764 = vpack.c.b16 %v760, %v760
    %v765 = vpack.c.b16 %v761, %v761
    %v766 = vpack.c.b16 %v762, %v762
    %v768 = vshrl.u32 %v763, 16
    %v770 = vrot.slane %v768, 7
    %v771 = vshll.u32 %v763, 16
    %v773 = vor.u32 %v770, %v771
    %v774 = vrot.slane %v770, 4
    %v776 = vshrl.u32 %v764, 16
    %v778 = vrot.slane %v776, 7
    %v779 = vshll.u32 %v764, 16
    %v781 = vor.u32 %v778, %v779
    %v782 = vsel %vm114, %v774, %v781
    %v783 = vrot.slane %v778, 4
    %v785 = vshrl.u32 %v765, 16
    %v787 = vrot.slane %v785, 7
    %v788 = vshll.u32 %v765, 16
    %v790 = vor.u32 %v787, %v788
    %v791 = vrot.slane %v787, 4
    %v793 = vshrl.u32 %v766, 16
    %v795 = vrot.slane %v793, 7
    %v796 = vshll.u32 %v766, 16
    %v798 = vor.u32 %v795, %v796
    %v799 = vsel %vm114, %v791, %v798
    %v800 = vrot.slane %v795, 4
    %v807 = vsel %vm157, %v773, %v174
    %808 = vst [vmem:[#allocation2] sm:$0xf] %v807
    %809 = vst.msk [vmem:[#allocation2 + $0x4] sm:$0xf] %vm92, %v782
    %v810 = vld [vmem:[#allocation2 + $0x8] sm:$0x1]
    %v811 = vsel %vm163, %v783, %v810
    %812 = vst [vmem:[#allocation2 + $0x8] sm:$0x1] %v811
    %v813 = vld [vmem:[#allocation2 + $0xc] sm:$0xf]
    %v814 = vsel %vm157, %v790, %v813
    %815 = vst [vmem:[#allocation2 + $0xc] sm:$0xf] %v814
    %816 = vst.msk [vmem:[#allocation2 + $0x10] sm:$0xf] %vm92, %v799
    %v817 = vld [vmem:[#allocation2 + $0x14] sm:$0x1]
    %v818 = vsel %vm163, %v800, %v817
    %819 = vst [vmem:[#allocation2 + $0x14] sm:$0x1] %v818
    %v820 = vld [vmem:[#allocation2] sm:$0xf]
    %v821 = vld [vmem:[#allocation2 + $0x4] sm:$0xf]
    %v822 = vld [vmem:[#allocation2 + $0xc] sm:$0xf]
    %v823 = vld [vmem:[#allocation2 + $0x10] sm:$0xf]
    %v824 = vld [vmem:[#allocation8] sm:$0xf]
    %v825 = vld [vmem:[#allocation8 + $0x4] sm:$0xf]
    %v826 = vld [vmem:[#allocation8 + $0x8] sm:$0xf]
    %v827 = vld [vmem:[#allocation8 + $0xc] sm:$0xf]
    %v828 = vld [vmem:[#allocation8 + $0x10] sm:$0xf]
    %v829 = vld [vmem:[#allocation8 + $0x14] sm:$0xf]
    %v830 = vld [vmem:[#allocation8 + $0x18] sm:$0xf]
    %v831 = vld [vmem:[#allocation8 + $0x1c] sm:$0xf]
    %v832 = vld [vmem:[#allocation2 + $0x8] sm:$0x1]
    %v833 = vld [vmem:[#allocation2 + $0x14] sm:$0x1]
    %v835 = vshrl.u32 %v820, 16
    %v837 = vrot.slane %v835, 4
    %v838 = vshll.u32 %v820, 16
    %v840 = vrot.slane %v838, 5
    %v841 = vor.u32 %v837, %v840
    %v842 = vrot.slane %v841, 4
    %v844 = vshll.u32 %v821, 16
    %v846 = vrot.slane %v844, 5
    %v847 = vsel %vm190, %v842, %v846
    %v848 = vshrl.u32 %v821, 16
    %v850 = vrot.slane %v848, 4
    %v851 = vor.u32 %v850, %v846
    %v852 = vrot.slane %v851, 4
    %v854 = vshll.u32 %v832, 16
    %v856 = vrot.slane %v854, 5
    %v857 = vsel %vm190, %v852, %v856
    %v859 = vshrl.u32 %v822, 16
    %v861 = vrot.slane %v859, 4
    %v862 = vshll.u32 %v822, 16
    %v864 = vrot.slane %v862, 5
    %v865 = vor.u32 %v861, %v864
    %v866 = vrot.slane %v865, 4
    %v868 = vshll.u32 %v823, 16
    %v870 = vrot.slane %v868, 5
    %v871 = vsel %vm190, %v866, %v870
    %v872 = vshrl.u32 %v823, 16
    %v874 = vrot.slane %v872, 4
    %v875 = vor.u32 %v874, %v870
    %v876 = vrot.slane %v875, 4
    %v878 = vshll.u32 %v833, 16
    %v880 = vrot.slane %v878, 5
    %v881 = vsel %vm190, %v876, %v880
    %s882 = scalar_lea.vmem [#allocation8], 32
    %v883 = vld [vmem:[%s882] sm:$0xf]
    %v884 = vld [vmem:[%s882 + $0x4] sm:$0xf]
    %v885 = vld [vmem:[%s882 + $0x8] sm:$0xf]
    %v886 = vld [vmem:[%s882 + $0xc] sm:$0xf]
    %v887 = vld [vmem:[%s882 + $0x10] sm:$0xf]
    %v888 = vld [vmem:[%s882 + $0x14] sm:$0xf]
    %v889 = vld [vmem:[%s882 + $0x18] sm:$0xf]
    %v890 = vld [vmem:[%s882 + $0x1c] sm:$0xf]
    %v891 = vunpack.c.l.b16 %v847
    %v892 = vunpack.c.l.b16 %v857
    %v893 = vunpack.c.l.b16 %v871
    %v894 = vunpack.c.l.b16 %v881
    %v895 = vpack.c.b16 %v892, %v891
    %v896 = vpack.c.b16 %v894, %v893
    %v905 = vunpack.c.l.b16 %v883
    %v906 = vunpack.c.l.b16 %v884
    %v907 = vunpack.c.l.b16 %v885
    %v908 = vunpack.c.l.b16 %v886
    %v909 = vunpack.c.l.b16 %v887
    %v910 = vunpack.c.l.b16 %v888
    %v911 = vunpack.c.l.b16 %v889
    %v912 = vunpack.c.l.b16 %v890
    %v913 = vpack.c.b16 %v906, %v905
    %v914 = vpack.c.b16 %v908, %v907
    %v915 = vpack.c.b16 %v910, %v909
    %v916 = vpack.c.b16 %v912, %v911
    %v922 = vsel %vm278, %v895, 0
    %v925 = vsel %vm278, %v896, 0
    %927 = vmatprep.subr.bf16.mxu0 0
    %928 = vmatpush1.bf16.msra.mxu0 0
    %929 = vmatprep.subr.bf16.mxu0 0
    %930 = vmatpush1.bf16.msra.mxu0 0
    %931 = vmatprep.subr.bf16.mxu0 0
    %932 = vmatpush1.bf16.msra.mxu0 0
    %933 = vmatprep.subr.bf16.mxu0 0
    %934 = vmatpush1.bf16.msra.mxu0 0
    %935 = vmatprep.subr.bf16.mxu0 0
    %936 = vmatpush1.bf16.msra.mxu0 %v916
    %937 = vmatprep.subr.bf16.mxu0 0
    %938 = vmatpush1.bf16.msra.mxu0 %v915
    %939 = vmatprep.subr.bf16.mxu0 0
    %940 = vmatpush1.bf16.msra.mxu0 %v914
    %941 = vmatprep.subr.bf16.mxu0 0
    %942 = vmatpush1.bf16.msra.mxu0 %v913
    %943 = vmatprep.subr.bf16.mxu0 0
    %944 = vmatpush2.bf16.msra.mxu0 0
    %945 = vmatprep.subr.bf16.mxu0 0
    %946 = vmatpush2.bf16.msra.mxu0 0
    %947 = vmatprep.subr.bf16.mxu0 0
    %948 = vmatpush2.bf16.msra.mxu0 0
    %949 = vmatprep.subr.bf16.mxu0 0
    %950 = vmatpush2.bf16.msra.mxu0 0
    %951 = vmatprep.subr.bf16.mxu0 0
    %952 = vmatpush2.bf16.msra.mxu0 0
    %953 = vmatprep.subr.bf16.mxu0 0
    %954 = vmatpush2.bf16.msra.mxu0 0
    %955 = vmatprep.subr.bf16.mxu0 0
    %956 = vmatpush2.bf16.msra.mxu0 0
    %957 = vmatprep.subr.bf16.mxu0 0
    %958 = vmatpush2.bf16.msra.mxu0 0
    %959 = vmatprep.mubr.bf16.mxu0 0
    %960 = vmatmul.mubr.bf16.gmra.mxu0 %v922
    %v961 = vpop.f32.mrf.mxu0
    %v962 = vadd.f32 0.0, %v961
    %v963 = vpop.f32.mrf.mxu0
    %v964 = vpop.f32.mrf.mxu0
    %v965 = vadd.f32 0.0, %v964
    %v966 = vpop.f32.mrf.mxu0
    %967 = vmatprep.mubr.bf16.mxu0 0
    %968 = vmatmul.mubr.bf16.gmra.mxu0 %v925
    %v969 = vpop.f32.mrf.mxu0
    %v970 = vadd.f32 0.0, %v969
    %v971 = vpop.f32.mrf.mxu0
    %v972 = vpop.f32.mrf.mxu0
    %v973 = vadd.f32 0.0, %v972
    %v974 = vpop.f32.mrf.mxu0
    %975 = vdwg.mxu0
    %v976 = vld [vmem:[#allocation2] sm:$0xe]
    %v977 = vld [vmem:[#allocation2 + $0xc] sm:$0xe]
    %v984 = vrot.slane %v976, 5
    %v985 = vrot.slane %v984, 4
    %v986 = vrot.slane %v821, 5
    %v987 = vsel %vm344, %v985, %v986
    %v988 = vrot.slane %v986, 4
    %v989 = vrot.slane %v832, 5
    %v990 = vsel %vm344, %v988, %v989
    %v991 = vrot.slane %v977, 5
    %v992 = vrot.slane %v991, 4
    %v993 = vrot.slane %v823, 5
    %v994 = vsel %vm344, %v992, %v993
    %v995 = vrot.slane %v993, 4
    %v996 = vrot.slane %v833, 5
    %v997 = vsel %vm344, %v995, %v996
    %s998 = scalar_lea.vmem [#allocation8], 64
    %v999 = vld [vmem:[%s998] sm:$0xf]
    %v1000 = vld [vmem:[%s998 + $0x4] sm:$0xf]
    %v1001 = vld [vmem:[%s998 + $0x8] sm:$0xf]
    %v1002 = vld [vmem:[%s998 + $0xc] sm:$0xf]
    %v1003 = vld [vmem:[%s998 + $0x10] sm:$0xf]
    %v1004 = vld [vmem:[%s998 + $0x14] sm:$0xf]
    %v1005 = vld [vmem:[%s998 + $0x18] sm:$0xf]
    %v1006 = vld [vmem:[%s998 + $0x1c] sm:$0xf]
    %v1007 = vunpack.c.l.b16 %v987
    %v1008 = vunpack.c.l.b16 %v990
    %v1009 = vunpack.c.l.b16 %v994
    %v1010 = vunpack.c.l.b16 %v997
    %v1011 = vpack.c.b16 %v1008, %v1007
    %v1012 = vpack.c.b16 %v1010, %v1009
    %v1021 = vunpack.c.l.b16 %v999
    %v1022 = vunpack.c.l.b16 %v1000
    %v1023 = vunpack.c.l.b16 %v1001
    %v1024 = vunpack.c.l.b16 %v1002
    %v1025 = vunpack.c.l.b16 %v1003
    %v1026 = vunpack.c.l.b16 %v1004
    %v1027 = vunpack.c.l.b16 %v1005
    %v1028 = vunpack.c.l.b16 %v1006
    %v1029 = vpack.c.b16 %v1022, %v1021
    %v1030 = vpack.c.b16 %v1024, %v1023
    %v1031 = vpack.c.b16 %v1026, %v1025
    %v1032 = vpack.c.b16 %v1028, %v1027
    %v1038 = vsel %vm278, %v1011, 0
    %v1041 = vsel %vm278, %v1012, 0
    %1043 = vmatprep.subr.bf16.mxu0 0
    %1044 = vmatpush1.bf16.msra.mxu0 0
    %1045 = vmatprep.subr.bf16.mxu0 0
    %1046 = vmatpush1.bf16.msra.mxu0 0
    %1047 = vmatprep.subr.bf16.mxu0 0
    %1048 = vmatpush1.bf16.msra.mxu0 0
    %1049 = vmatprep.subr.bf16.mxu0 0
    %1050 = vmatpush1.bf16.msra.mxu0 0
    %1051 = vmatprep.subr.bf16.mxu0 0
    %1052 = vmatpush1.bf16.msra.mxu0 %v1032
    %1053 = vmatprep.subr.bf16.mxu0 0
    %1054 = vmatpush1.bf16.msra.mxu0 %v1031
    %1055 = vmatprep.subr.bf16.mxu0 0
    %1056 = vmatpush1.bf16.msra.mxu0 %v1030
    %1057 = vmatprep.subr.bf16.mxu0 0
    %1058 = vmatpush1.bf16.msra.mxu0 %v1029
    %1059 = vmatprep.subr.bf16.mxu0 0
    %1060 = vmatpush2.bf16.msra.mxu0 0
    %1061 = vmatprep.subr.bf16.mxu0 0
    %1062 = vmatpush2.bf16.msra.mxu0 0
    %1063 = vmatprep.subr.bf16.mxu0 0
    %1064 = vmatpush2.bf16.msra.mxu0 0
    %1065 = vmatprep.subr.bf16.mxu0 0
    %1066 = vmatpush2.bf16.msra.mxu0 0
    %1067 = vmatprep.subr.bf16.mxu0 0
    %1068 = vmatpush2.bf16.msra.mxu0 0
    %1069 = vmatprep.subr.bf16.mxu0 0
    %1070 = vmatpush2.bf16.msra.mxu0 0
    %1071 = vmatprep.subr.bf16.mxu0 0
    %1072 = vmatpush2.bf16.msra.mxu0 0
    %1073 = vmatprep.subr.bf16.mxu0 0
    %1074 = vmatpush2.bf16.msra.mxu0 0
    %1075 = vmatprep.mubr.bf16.mxu0 0
    %1076 = vmatmul.mubr.bf16.gmra.mxu0 %v1038
    %v1077 = vpop.f32.mrf.mxu0
    %v1078 = vadd.f32 0.0, %v1077
    %v1079 = vpop.f32.mrf.mxu0
    %v1080 = vpop.f32.mrf.mxu0
    %v1081 = vadd.f32 0.0, %v1080
    %v1082 = vpop.f32.mrf.mxu0
    %1083 = vmatprep.mubr.bf16.mxu0 0
    %1084 = vmatmul.mubr.bf16.gmra.mxu0 %v1041
    %v1085 = vpop.f32.mrf.mxu0
    %v1086 = vadd.f32 0.0, %v1085
    %v1087 = vpop.f32.mrf.mxu0
    %v1088 = vpop.f32.mrf.mxu0
    %v1089 = vadd.f32 0.0, %v1088
    %v1090 = vpop.f32.mrf.mxu0
    %1091 = vdwg.mxu0
    %v1094 = vunpack.c.l.b16 %v820
    %v1095 = vunpack.c.l.b16 %v821
    %v1096 = vunpack.c.l.b16 %v822
    %v1097 = vunpack.c.l.b16 %v823
    %v1098 = vpack.c.b16 %v1095, %v1094
    %v1099 = vpack.c.b16 %v1097, %v1096
    %v1108 = vunpack.c.l.b16 %v824
    %v1109 = vunpack.c.l.b16 %v825
    %v1110 = vunpack.c.l.b16 %v826
    %v1111 = vunpack.c.l.b16 %v827
    %v1112 = vunpack.c.l.b16 %v828
    %v1113 = vunpack.c.l.b16 %v829
    %v1114 = vunpack.c.l.b16 %v830
    %v1115 = vunpack.c.l.b16 %v831
    %v1116 = vpack.c.b16 %v1109, %v1108
    %v1117 = vpack.c.b16 %v1111, %v1110
    %v1118 = vpack.c.b16 %v1113, %v1112
    %v1119 = vpack.c.b16 %v1115, %v1114
    %v1125 = vsel %vm278, %v1098, 0
    %v1128 = vsel %vm278, %v1099, 0
    %1130 = vmatprep.subr.bf16.mxu0 0
    %1131 = vmatpush1.bf16.msra.mxu0 0
    %1132 = vmatprep.subr.bf16.mxu0 0
    %1133 = vmatpush1.bf16.msra.mxu0 0
    %1134 = vmatprep.subr.bf16.mxu0 0
    %1135 = vmatpush1.bf16.msra.mxu0 0
    %1136 = vmatprep.subr.bf16.mxu0 0
    %1137 = vmatpush1.bf16.msra.mxu0 0
    %1138 = vmatprep.subr.bf16.mxu0 0
    %1139 = vmatpush1.bf16.msra.mxu0 %v1119
    %1140 = vmatprep.subr.bf16.mxu0 0
    %1141 = vmatpush1.bf16.msra.mxu0 %v1118
    %1142 = vmatprep.subr.bf16.mxu0 0
    %1143 = vmatpush1.bf16.msra.mxu0 %v1117
    %1144 = vmatprep.subr.bf16.mxu0 0
    %1145 = vmatpush1.bf16.msra.mxu0 %v1116
    %1146 = vmatprep.subr.bf16.mxu0 0
    %1147 = vmatpush2.bf16.msra.mxu0 0
    %1148 = vmatprep.subr.bf16.mxu0 0
    %1149 = vmatpush2.bf16.msra.mxu0 0
    %1150 = vmatprep.subr.bf16.mxu0 0
    %1151 = vmatpush2.bf16.msra.mxu0 0
    %1152 = vmatprep.subr.bf16.mxu0 0
    %1153 = vmatpush2.bf16.msra.mxu0 0
    %1154 = vmatprep.subr.bf16.mxu0 0
    %1155 = vmatpush2.bf16.msra.mxu0 0
    %1156 = vmatprep.subr.bf16.mxu0 0
    %1157 = vmatpush2.bf16.msra.mxu0 0
    %1158 = vmatprep.subr.bf16.mxu0 0
    %1159 = vmatpush2.bf16.msra.mxu0 0
    %1160 = vmatprep.subr.bf16.mxu0 0
    %1161 = vmatpush2.bf16.msra.mxu0 0
    %1162 = vmatprep.mubr.bf16.mxu0 0
    %1163 = vmatmul.mubr.bf16.gmra.mxu0 %v1125
    %v1164 = vpop.f32.mrf.mxu0
    %v1165 = vadd.f32 %v962, %v1164
    %v1166 = vpop.f32.mrf.mxu0
    %v1167 = vpop.f32.mrf.mxu0
    %v1168 = vadd.f32 %v965, %v1167
    %v1169 = vpop.f32.mrf.mxu0
    %1170 = vmatprep.mubr.bf16.mxu0 0
    %1171 = vmatmul.mubr.bf16.gmra.mxu0 %v1128
    %v1172 = vpop.f32.mrf.mxu0
    %v1173 = vadd.f32 %v970, %v1172
    %v1174 = vpop.f32.mrf.mxu0
    %v1175 = vpop.f32.mrf.mxu0
    %v1176 = vadd.f32 %v973, %v1175
    %v1177 = vpop.f32.mrf.mxu0
    %1178 = vdwg.mxu0
    %v1179 = vadd.f32 %v1165, %v1078
    %v1180 = vadd.f32 %v1168, %v1081
    %v1181 = vadd.f32 %v1173, %v1086
    %v1182 = vadd.f32 %v1176, %v1089
    %v1183 = vsel %vm278, %v1179, 0.0
    %v1184 = vsel %vm278, %v1180, 0.0
    %v1185 = vadd.f32 %v1183, %v1184
    %v1186 = vsel %vm278, %v1181, 0.0
    %v1187 = vadd.f32 %v1185, %v1186
    %v1188 = vsel %vm278, %v1182, 0.0
    %v1189 = vadd.f32 %v1187, %v1188
    %v1190 = vrot.slane %v1189, 4
    %v1191 = vadd.f32 %v1189, %v1190
    %v1192 = vrot.slane %v1191, 2
    %v1193 = vadd.f32 %v1191, %v1192
    %v1194 = vrot.slane %v1193, 1
    %v1195 = vadd.f32 %v1193, %v1194
    %v1197 = vsel %vm278, %v1195, 0
    %1199 = vmatprep.subr.mxu0 0.0
    %1200 = vmatpush1.msra.mxu0 0.0
    %1201 = vmatprep.subr.mxu0 0.0
    %1202 = vmatpush1.msra.mxu0 0.0
    %1203 = vmatprep.subr.mxu0 0.0
    %1204 = vmatpush1.msra.mxu0 0.0
    %1205 = vmatprep.subr.mxu0 0.0
    %1206 = vmatpush1.msra.mxu0 0.0
    %1207 = vmatprep.subr.mxu0 0.0
    %1208 = vmatpush1.msra.mxu0 0.0
    %1209 = vmatprep.subr.mxu0 0.0
    %1210 = vmatpush1.msra.mxu0 0.0
    %1211 = vmatprep.subr.mxu0 0.0
    %1212 = vmatpush1.msra.mxu0 0.0
    %1213 = vmatprep.subr.mxu0 0.0
    %1214 = vmatpush1.msra.mxu0 0.0
    %1215 = vmatprep.subr.mxu0 0.0
    %1216 = vmatpush1.msra.mxu0 %v91
    %1217 = vmatprep.subr.mxu0 0.0
    %1218 = vmatpush1.msra.mxu0 %v90
    %1219 = vmatprep.subr.mxu0 0.0
    %1220 = vmatpush1.msra.mxu0 %v89
    %1221 = vmatprep.subr.mxu0 0.0
    %1222 = vmatpush1.msra.mxu0 %v88
    %1223 = vmatprep.subr.mxu0 0.0
    %1224 = vmatpush1.msra.mxu0 %v87
    %1225 = vmatprep.subr.mxu0 0.0
    %1226 = vmatpush1.msra.mxu0 %v86
    %1227 = vmatprep.subr.mxu0 0.0
    %1228 = vmatpush1.msra.mxu0 %v85
    %1229 = vmatprep.subr.mxu0 0.0
    %1230 = vmatpush1.msra.mxu0 %v84
    %1231 = vmatprep.subr.mxu0 0.0
    %1232 = vmatpush2.msra.mxu0 0.0
    %1233 = vmatprep.subr.mxu0 0.0
    %1234 = vmatpush2.msra.mxu0 0.0
    %1235 = vmatprep.subr.mxu0 0.0
    %1236 = vmatpush2.msra.mxu0 0.0
    %1237 = vmatprep.subr.mxu0 0.0
    %1238 = vmatpush2.msra.mxu0 0.0
    %1239 = vmatprep.subr.mxu0 0.0
    %1240 = vmatpush2.msra.mxu0 0.0
    %1241 = vmatprep.subr.mxu0 0.0
    %1242 = vmatpush2.msra.mxu0 0.0
    %1243 = vmatprep.subr.mxu0 0.0
    %1244 = vmatpush2.msra.mxu0 0.0
    %1245 = vmatprep.subr.mxu0 0.0
    %1246 = vmatpush2.msra.mxu0 0.0
    %1247 = vmatprep.subr.mxu0 0.0
    %1248 = vmatpush2.msra.mxu0 0.0
    %1249 = vmatprep.subr.mxu0 0.0
    %1250 = vmatpush2.msra.mxu0 0.0
    %1251 = vmatprep.subr.mxu0 0.0
    %1252 = vmatpush2.msra.mxu0 0.0
    %1253 = vmatprep.subr.mxu0 0.0
    %1254 = vmatpush2.msra.mxu0 0.0
    %1255 = vmatprep.subr.mxu0 0.0
    %1256 = vmatpush2.msra.mxu0 0.0
    %1257 = vmatprep.subr.mxu0 0.0
    %1258 = vmatpush2.msra.mxu0 0.0
    %1259 = vmatprep.subr.mxu0 0.0
    %1260 = vmatpush2.msra.mxu0 0.0
    %1261 = vmatprep.subr.mxu0 0.0
    %1262 = vmatpush2.msra.mxu0 0.0
    %1263 = vmatprep.mubr.f32.mxu0 0.0
    %1264 = vmatmul.mubr.f32.gmra.mxu0 %v1197
    %v1265 = vpop.f32.mrf.mxu0
    %v1266 = vadd.f32 0.0, %v1265
    %v1267 = vpop.f32.mrf.mxu0
    %1268 = vdwg.mxu0
    %v1269 = vmul.f32 %v1266, 0.001953125
    %v1270 = vlaneseq
    %v1271 = vshrl.u32 %v1270, 7
    %v1272 = vsub.s32 0, %v1271
    %v1273 = vrot.slane %v1269, %v1272
    %v1274 = vsub.f32 %v1179, %v1273
    %v1275 = vsub.f32 %v1180, %v1273
    %v1276 = vsub.f32 %v1181, %v1273
    %v1277 = vsub.f32 %v1182, %v1273
    %v1278 = vmul.f32 %v1274, %v1274
    %v1279 = vmul.f32 %v1275, %v1275
    %v1280 = vmul.f32 %v1276, %v1276
    %v1281 = vmul.f32 %v1277, %v1277
    %v1282 = vsel %vm278, %v1278, 0.0
    %v1283 = vsel %vm278, %v1279, 0.0
    %v1284 = vadd.f32 %v1282, %v1283
    %v1285 = vsel %vm278, %v1280, 0.0
    %v1286 = vadd.f32 %v1284, %v1285
    %v1287 = vsel %vm278, %v1281, 0.0
    %v1288 = vadd.f32 %v1286, %v1287
    %v1289 = vrot.slane %v1288, 4
    %v1290 = vadd.f32 %v1288, %v1289
    %v1291 = vrot.slane %v1290, 2
    %v1292 = vadd.f32 %v1290, %v1291
    %v1293 = vrot.slane %v1292, 1
    %v1294 = vadd.f32 %v1292, %v1293
    %v1296 = vsel %vm278, %v1294, 0
    %1298 = vmatprep.subr.mxu0 0.0
    %1299 = vmatpush1.msra.mxu0 0.0
    %1300 = vmatprep.subr.mxu0 0.0
    %1301 = vmatpush1.msra.mxu0 0.0
    %1302 = vmatprep.subr.mxu0 0.0
    %1303 = vmatpush1.msra.mxu0 0.0
    %1304 = vmatprep.subr.mxu0 0.0
    %1305 = vmatpush1.msra.mxu0 0.0
    %1306 = vmatprep.subr.mxu0 0.0
    %1307 = vmatpush1.msra.mxu0 0.0
    %1308 = vmatprep.subr.mxu0 0.0
    %1309 = vmatpush1.msra.mxu0 0.0
    %1310 = vmatprep.subr.mxu0 0.0
    %1311 = vmatpush1.msra.mxu0 0.0
    %1312 = vmatprep.subr.mxu0 0.0
    %1313 = vmatpush1.msra.mxu0 0.0
    %1314 = vmatprep.subr.mxu0 0.0
    %1315 = vmatpush1.msra.mxu0 %v91
    %1316 = vmatprep.subr.mxu0 0.0
    %1317 = vmatpush1.msra.mxu0 %v90
    %1318 = vmatprep.subr.mxu0 0.0
    %1319 = vmatpush1.msra.mxu0 %v89
    %1320 = vmatprep.subr.mxu0 0.0
    %1321 = vmatpush1.msra.mxu0 %v88
    %1322 = vmatprep.subr.mxu0 0.0
    %1323 = vmatpush1.msra.mxu0 %v87
    %1324 = vmatprep.subr.mxu0 0.0
    %1325 = vmatpush1.msra.mxu0 %v86
    %1326 = vmatprep.subr.mxu0 0.0
    %1327 = vmatpush1.msra.mxu0 %v85
    %1328 = vmatprep.subr.mxu0 0.0
    %1329 = vmatpush1.msra.mxu0 %v84
    %1330 = vmatprep.subr.mxu0 0.0
    %1331 = vmatpush2.msra.mxu0 0.0
    %1332 = vmatprep.subr.mxu0 0.0
    %1333 = vmatpush2.msra.mxu0 0.0
    %1334 = vmatprep.subr.mxu0 0.0
    %1335 = vmatpush2.msra.mxu0 0.0
    %1336 = vmatprep.subr.mxu0 0.0
    %1337 = vmatpush2.msra.mxu0 0.0
    %1338 = vmatprep.subr.mxu0 0.0
    %1339 = vmatpush2.msra.mxu0 0.0
    %1340 = vmatprep.subr.mxu0 0.0
    %1341 = vmatpush2.msra.mxu0 0.0
    %1342 = vmatprep.subr.mxu0 0.0
    %1343 = vmatpush2.msra.mxu0 0.0
    %1344 = vmatprep.subr.mxu0 0.0
    %1345 = vmatpush2.msra.mxu0 0.0
    %1346 = vmatprep.subr.mxu0 0.0
    %1347 = vmatpush2.msra.mxu0 0.0
    %1348 = vmatprep.subr.mxu0 0.0
    %1349 = vmatpush2.msra.mxu0 0.0
    %1350 = vmatprep.subr.mxu0 0.0
    %1351 = vmatpush2.msra.mxu0 0.0
    %1352 = vmatprep.subr.mxu0 0.0
    %1353 = vmatpush2.msra.mxu0 0.0
    %1354 = vmatprep.subr.mxu0 0.0
    %1355 = vmatpush2.msra.mxu0 0.0
    %1356 = vmatprep.subr.mxu0 0.0
    %1357 = vmatpush2.msra.mxu0 0.0
    %1358 = vmatprep.subr.mxu0 0.0
    %1359 = vmatpush2.msra.mxu0 0.0
    %1360 = vmatprep.subr.mxu0 0.0
    %1361 = vmatpush2.msra.mxu0 0.0
    %1362 = vmatprep.mubr.f32.mxu0 0.0
    %1363 = vmatmul.mubr.f32.gmra.mxu0 %v1296
    %v1364 = vpop.f32.mrf.mxu0
    %v1365 = vadd.f32 0.0, %v1364
    %v1366 = vpop.f32.mrf.mxu0
    %1367 = vdwg.mxu0
    %v1368 = vmul.f32 %v1365, 0.001953125
    %v1369 = vld [vmem:[%s4] sm:$0x1]
    %v1370 = vadd.f32 %v1368, 1e-05
    %v1371 = vrsqrt.pop %v1370
    %v1372 = vmul.f32 %v1369, %v1371
    %v1373 = vlaneseq
    %v1374 = vshrl.u32 %v1373, 7
    %v1375 = vsub.s32 0, %v1374
    %v1376 = vrot.slane %v1372, %v1375
    %v1377 = vmul.f32 %v1274, %v1376
    %v1378 = vmul.f32 %v1275, %v1376
    %v1379 = vmul.f32 %v1276, %v1376
    %v1380 = vmul.f32 %v1277, %v1376
    %v1381 = vld [vmem:[%s4 + $0x1] sm:$0x1]
    %v1382 = vlaneseq
    %v1383 = vshrl.u32 %v1382, 7
    %v1384 = vsub.s32 0, %v1383
    %v1385 = vrot.slane %v1381, %v1384
    %v1386 = vadd.f32 %v1377, %v1385
    %v1387 = vadd.f32 %v1378, %v1385
    %v1388 = vadd.f32 %v1379, %v1385
    %v1389 = vadd.f32 %v1380, %v1385
    %v1390 = vadd.f32 %v1386, %v80
    %v1391 = vadd.f32 %v1387, %v81
    %v1392 = vadd.f32 %v1388, %v82
    %v1393 = vadd.f32 %v1389, %v83
    %v1394 = vmax.f32 %v1390, 0.0
    %v1395 = vmax.f32 %v1391, 0.0
    %v1396 = vmax.f32 %v1392, 0.0
    %v1397 = vmax.f32 %v1393, 0.0
    %1398 = vst.msk [vmem:[#allocation11] sm:$0xff] %vm278, %v1394
    %1399 = vst.msk [vmem:[#allocation11 + $0x8] sm:$0xff] %vm278, %v1395
    %1400 = vst.msk [vmem:[#allocation11 + $0x10] sm:$0xff] %vm278, %v1396
    %1401 = vst.msk [vmem:[#allocation11 + $0x18] sm:$0xff] %vm278, %v1397
    // Predicated region
    $region42: #{tpu_custom_call.1} parent=1 // pred_check
      _
    $region43: #{tpu_custom_call.1} parent=1 // pred_check_branch
      %1403 = sbr.rel (0) target = $region45
    $region44: #{tpu_custom_call.1} parent=1 // pred_region
      %s1405 = ssub.s32 512, 512
      %1406 = vsyncadd [#allocation5], %s1405
      %s1407 = sshll.u32 [#allocation11], 4
      %s1408 = int_to_ptr.vmem [resolvable:$true] %s1407
      %1413 = dma.vmem_to_hbm [thread:$0]  %s1408, 512, %s6, [#allocation5], 128, 128, 8
    $region45: #{tpu_custom_call.1} parent=1 // pred_fallthru
      _
    // Predicated region
    $region46: #{tpu_custom_call.1} parent=1 // pred_check
      _
    $region47: #{tpu_custom_call.1} parent=1 // pred_check_branch
      %1415 = sbr.rel (0) target = $region49
    $region48: #{tpu_custom_call.1} parent=1 // pred_region
      %1416 = dma.done [#allocation5], 512
    $region49: #{tpu_custom_call.1} parent=1 // pred_fallthru
      _
    %1417 = vsyncpa [#allocation4], 1
    %1418 = vsyncpa [#allocation7], 1
    %1419 = vsyncpa [#allocation10], 1
    %1420 = vsyncpa [#allocation5], 1

</llo_original>
